<compile_context>
chip_gen: v7x
topology: tpu7x:2x2x1
jax: 0.10.0
libtpu: 0.0.40
codegen_flags: <defaults>
</compile_context>

<pallas_src>
import math
from functools import partial

import jax
import jax.numpy as jnp
from jax import lax
from jax.experimental import pallas as pl
from jax.experimental.pallas import tpu as pltpu


def _round_up(x, m):
    return ((x + m - 1) // m) * m


# -----------------------------------------------------------------------------
# Kernel 1: tiled matmul + bias (+ fused activation), bf16 MXU / f32 accumulate
# -----------------------------------------------------------------------------
def _matmul_bias_kernel(x_ref, w_ref, b_ref, o_ref, *, activation):
    acc = jnp.dot(x_ref[...], w_ref[...], preferred_element_type=jnp.float32)
    acc = acc + b_ref[...]
    if activation == "relu":
        acc = jnp.maximum(acc, 0.0)
    elif activation == "silu":
        acc = acc * jax.nn.sigmoid(acc)
    elif activation == "softplus":
        acc = jax.nn.softplus(acc)
    o_ref[...] = acc.astype(o_ref.dtype)


def matmul_bias(x, w, b=None, activation="none", tile_m=512):
    """y = act(x @ w + b);  x:(P,K), w:(K,N) -> (P,N).

    Rows tiled at 512; N padded to a multiple of 128 so every output store is
    lane-dense; x/w fed to the MXU in bf16 with f32 accumulation.
    TODO(synk): add a K-reduction grid axis for very large K (v7x scoped VMEM).
    """
    P, K = x.shape
    K2, N = w.shape
    assert K == K2
    N_pad = _round_up(N, 128)
    tm = min(tile_m, _round_up(P, 16))
    P_pad = _round_up(P, tm)

    if b is None:
        b = jnp.zeros((N,), jnp.float32)
    bp = jnp.pad(b.astype(jnp.float32), (0, N_pad - N)).reshape(1, N_pad)
    wp = jnp.pad(w.astype(jnp.bfloat16), ((0, 0), (0, N_pad - N)))
    xp = x.astype(jnp.bfloat16)
    if P_pad != P:
        xp = jnp.pad(xp, ((0, P_pad - P), (0, 0)))

    out = pl.pallas_call(
        partial(_matmul_bias_kernel, activation=activation),
        out_shape=jax.ShapeDtypeStruct((P_pad, N_pad), jnp.float32),
        grid=(P_pad // tm,),
        in_specs=[
            pl.BlockSpec((tm, K), lambda i: (i, 0)),
            pl.BlockSpec((K, N_pad), lambda i: (0, 0)),
            pl.BlockSpec((1, N_pad), lambda i: (0, 0)),
        ],
        out_specs=pl.BlockSpec((tm, N_pad), lambda i: (i, 0)),
        compiler_params=pltpu.CompilerParams(dimension_semantics=("parallel",)),
    )(xp, wp, bp)
    return out[:P, :N]


# -----------------------------------------------------------------------------
# Kernel 2: fused LayerNorm (affine) + in_proj matmul (bias-free)
# -----------------------------------------------------------------------------
def _ln_matmul_kernel(x_ref, g_ref, bt_ref, w_ref, o_ref, *, eps):
    x = x_ref[...].astype(jnp.float32)
    mean = jnp.mean(x, axis=-1, keepdims=True)
    var = jnp.mean(jnp.square(x - mean), axis=-1, keepdims=True)   # biased var
    xn = (x - mean) * lax.rsqrt(var + eps)
    xn = xn * g_ref[...] + bt_ref[...]
    acc = jnp.dot(xn.astype(jnp.bfloat16), w_ref[...],
                  preferred_element_type=jnp.float32)
    o_ref[...] = acc.astype(o_ref.dtype)


def layernorm_matmul(x2d, gamma, beta, w, eps=1e-5, tile_m=512):
    """act-free (LayerNorm(x) * gamma + beta) @ w, fused in one pallas_call."""
    P, C = x2d.shape
    C2, N = w.shape
    assert C == C2
    N_pad = _round_up(N, 128)
    tm = min(tile_m, _round_up(P, 16))
    P_pad = _round_up(P, tm)

    xp = x2d.astype(jnp.float32)
    if P_pad != P:
        xp = jnp.pad(xp, ((0, P_pad - P), (0, 0)))
    wp = jnp.pad(w.astype(jnp.bfloat16), ((0, 0), (0, N_pad - N)))
    g2 = gamma.reshape(1, C).astype(jnp.float32)
    b2 = beta.reshape(1, C).astype(jnp.float32)

    out = pl.pallas_call(
        partial(_ln_matmul_kernel, eps=eps),
        out_shape=jax.ShapeDtypeStruct((P_pad, N_pad), jnp.float32),
        grid=(P_pad // tm,),
        in_specs=[
            pl.BlockSpec((tm, C), lambda i: (i, 0)),
            pl.BlockSpec((1, C), lambda i: (0, 0)),
            pl.BlockSpec((1, C), lambda i: (0, 0)),
            pl.BlockSpec((C, N_pad), lambda i: (0, 0)),
        ],
        out_specs=pl.BlockSpec((tm, N_pad), lambda i: (i, 0)),
        compiler_params=pltpu.CompilerParams(dimension_semantics=("parallel",)),
    )(xp, g2, b2, wp)
    return out[:P, :N]


# -----------------------------------------------------------------------------
# Kernel 3: fused causal depthwise conv1d + SiLU  (one batch per grid step)
# -----------------------------------------------------------------------------
def _dwconv_silu_kernel(xp_ref, w_ref, b_ref, o_ref, *, dc):
    L, di = o_ref.shape
    acc = jnp.zeros((L, di), jnp.float32) + b_ref[...]
    for k in range(dc):                                   # dc is tiny (4)
        acc = acc + xp_ref[pl.ds(k, L), :] * w_ref[pl.ds(k, 1), :]
    acc = acc * jax.nn.sigmoid(acc)                       # SiLU
    o_ref[...] = acc.astype(o_ref.dtype)


def dwconv_silu(x, conv_w, conv_b):
    """x: (B, L, di); conv_w: (dc, di); conv_b: (di,)."""
    B, L, di = x.shape
    dc = conv_w.shape[0]
    xpad = jnp.pad(x.astype(jnp.float32), ((0, 0), (dc - 1, 0), (0, 0)))
    Lp = L + dc - 1
    return pl.pallas_call(
        partial(_dwconv_silu_kernel, dc=dc),
        out_shape=jax.ShapeDtypeStruct((B, L, di), jnp.float32),
        grid=(B,),
        in_specs=[
            pl.BlockSpec((None, Lp, di), lambda b: (b, 0, 0)),
            pl.BlockSpec((dc, di), lambda b: (0, 0)),
            pl.BlockSpec((1, di), lambda b: (0, 0)),
        ],
        out_specs=pl.BlockSpec((None, L, di), lambda b: (b, 0, 0)),
        compiler_params=pltpu.CompilerParams(dimension_semantics=("parallel",)),
    )(xpad, conv_w.astype(jnp.float32), conv_b.reshape(1, di).astype(jnp.float32))


# -----------------------------------------------------------------------------
# Kernel 4: fused Mamba selective scan
#   h[t] = exp(dt[t]*A) * h[t-1] + dt[t]*B[t]*x[t]
#   y[t] = C[t] . h[t]            (MXU matvec)
#   out  = (y + D*x) * silu(z)    (gating fused)
# State h is a lane-dense (d_state, d_inner) VMEM tile carried across L-chunks.
# -----------------------------------------------------------------------------
def _scan_kernel(a_ref, d_ref, eye_ref, dt_ref, bm_ref, cm_ref, xc_ref, z_ref,
                 o_ref, h_ref, y_ref):
    # NOTE: the hidden-state carry requires the L-chunk grid axis (axis 1) to
    # stay sequential ("arbitrary"); only the batch axis may be "parallel".
    @pl.when(pl.program_id(1) == 0)
    def _():
        h_ref[...] = jnp.zeros_like(h_ref)

    TL = dt_ref.shape[0]
    ds = a_ref.shape[0]
    a = a_ref[...]                      # (ds, di), d_inner on lanes
    eye = eye_ref[...]                  # (ds, ds) identity (lane->sublane move)

    def step(t, carry):
        dt_row = dt_ref[pl.ds(t, 1), :]                 # (1, di)
        u_row = dt_row * xc_ref[pl.ds(t, 1), :]         # (1, di)
        b_row = bm_ref[pl.ds(t, 1), :]                  # (1, ds)
        c_row = cm_ref[pl.ds(t, 1), :]                  # (1, ds)
        # Move B[t] from lanes to sublanes without an explicit transpose:
        # broadcast the row down the sublanes, mask with identity, lane-reduce.
        b_col = jnp.sum(jnp.broadcast_to(b_row, (ds, ds)) * eye,
                        axis=1, keepdims=True)          # (ds, 1)
        dA = jnp.exp(dt_row * a)                        # (ds, di), EUP
        h = dA * h_ref[...] + b_col * u_row             # (ds, di), VPU
        h_ref[...] = h
        # C-contraction over d_state on the MXU; lane-dense (1, di) row store
        # into VMEM scratch (bulk slab store to o_ref after the loop).
        y_ref[pl.ds(t, 1), :] = jnp.dot(c_row, h,
                                        preferred_element_type=jnp.float32)
        return carry

    lax.fori_loop(0, TL, step, 0, unroll=8)

    xc = xc_ref[...]
    z = z_ref[...]
    y = y_ref[...] + xc * d_ref[...]                    # D-skip
    o_ref[...] = (y * (z * jax.nn.sigmoid(z))).astype(o_ref.dtype)   # gating


def _pick_chunk(L):
    for t in (256, 128, 64, 32, 16, 8):
        if L % t == 0:
            return t
    return L


def selective_scan_fused(A_T, Dvec, dt, Bm, Cm, xc, z):
    """Inputs: A_T (ds,di), D (di,), dt/xc/z (B,L,di), Bm/Cm (B,L,ds)."""
    B, L, di = dt.shape
    ds = A_T.shape[0]
    TL = _pick_chunk(L)
    eye = jnp.eye(ds, dtype=jnp.float32)
    d2 = Dvec.reshape(1, di).astype(jnp.float32)

    return pl.pallas_call(
        _scan_kernel,
        out_shape=jax.ShapeDtypeStruct((B, L, di), jnp.float32),
        grid=(B, L // TL),
        in_specs=[
            pl.BlockSpec((ds, di), lambda b, l: (0, 0)),          # A_T
            pl.BlockSpec((1, di), lambda b, l: (0, 0)),           # D
            pl.BlockSpec((ds, ds), lambda b, l: (0, 0)),          # eye
            pl.BlockSpec((None, TL, di), lambda b, l: (b, l, 0)),  # dt
            pl.BlockSpec((None, TL, ds), lambda b, l: (b, l, 0)),  # B
            pl.BlockSpec((None, TL, ds), lambda b, l: (b, l, 0)),  # C
            pl.BlockSpec((None, TL, di), lambda b, l: (b, l, 0)),  # x (conv out)
            pl.BlockSpec((None, TL, di), lambda b, l: (b, l, 0)),  # z (gate)
        ],
        out_specs=pl.BlockSpec((None, TL, di), lambda b, l: (b, l, 0)),
        scratch_shapes=[
            pltpu.VMEM((ds, di), jnp.float32),   # h carry
            pltpu.VMEM((TL, di), jnp.float32),   # y accumulator (bulk store)
        ],
        compiler_params=pltpu.CompilerParams(
            dimension_semantics=("parallel", "arbitrary")),
    )(A_T.astype(jnp.float32), d2, eye,
      dt.astype(jnp.float32), Bm.astype(jnp.float32), Cm.astype(jnp.float32),
      xc.astype(jnp.float32), z.astype(jnp.float32))


# -----------------------------------------------------------------------------
# Mamba + RMB forward
# -----------------------------------------------------------------------------
def mamba_forward(x_flat, p):
    """x_flat: (B, L, d_model). LayerNorm is fused into in_proj here."""
    B, L, dm = x_flat.shape
    di, ds, dr, dc = p["d_inner"], p["d_state"], p["dt_rank"], p["d_conv"]

    # LayerNorm(dim) + in_proj (d_model -> 2*d_inner), fused, bf16 MXU.
    xz = layernorm_matmul(x_flat.reshape(B * L, dm), p["ln_gamma"],
                          p["ln_beta"], p["in_proj_w"]).reshape(B, L, 2 * di)
    x_in, z = xz[..., :di], xz[..., di:]

    # Causal depthwise conv1d + SiLU (fused Pallas kernel).
    xc = dwconv_silu(x_in, p["conv_w"], p["conv_b"])                 # (B,L,di)

    # x_proj -> (dt_low | B | C); output padded lane-dense inside matmul_bias.
    x_dbl = matmul_bias(xc.reshape(B * L, di),
                        p["x_proj_w"]).reshape(B, L, dr + 2 * ds)
    dt_low = x_dbl[..., :dr]
    Bmat = x_dbl[..., dr:dr + ds]
    Cmat = x_dbl[..., dr + ds:]

    # dt_proj + softplus fused into the matmul kernel.
    dt = matmul_bias(dt_low.reshape(B * L, dr), p["dt_proj_w"], p["dt_proj_b"],
                     activation="softplus").reshape(B, L, di)

    # Fused selective scan (dA/dBu computed in-kernel; D-skip + gating fused).
    A_T = (-jnp.exp(p["A_log"])).T                                   # (ds, di)
    y = selective_scan_fused(A_T, p["D"], dt, Bmat, Cmat, xc, z)     # (B,L,di)

    out = matmul_bias(y.reshape(B * L, di), p["out_proj_w"]).reshape(B, L, dm)
    return out


def rmb_forward(x, p):
    """x: (B, C, *spatial) NCDHW-style; returns same shape (residual added)."""
    B, C = x.shape[:2]
    assert C == p["dim"]
    spatial = x.shape[2:]
    L = math.prod(spatial)
    x_flat = jnp.transpose(x.reshape(B, C, L), (0, 2, 1))            # (B, L, C)
    x_mamba = mamba_forward(x_flat, p)
    out = jnp.transpose(x_mamba, (0, 2, 1)).reshape(x.shape)
    return out + x


# -----------------------------------------------------------------------------
# Deterministic parameter init (matches mamba_ssm Mamba layer structure)
# -----------------------------------------------------------------------------
def init_rmb_params(key, dim, d_state=16, d_conv=4, expand=2):
    di = int(expand * dim)
    dr = math.ceil(dim / 16)
    keys = jax.random.split(key, 8)

    def nrm(k, shape, scale=0.02):
        return scale * jax.random.normal(k, shape, jnp.float32)

    return {
        "dim": dim, "d_inner": di, "d_state": d_state, "dt_rank": dr,
        "d_conv": d_conv,
        # RMB LayerNorm affine (PyTorch default init).
        "ln_gamma": jnp.ones((dim,), jnp.float32),
        "ln_beta": jnp.zeros((dim,), jnp.float32),
        # Mamba parameters.
        "in_proj_w": nrm(keys[0], (dim, 2 * di)),
        "conv_w": nrm(keys[1], (d_conv, di)),
        "conv_b": jnp.zeros((di,), jnp.float32),
        "x_proj_w": nrm(keys[2], (di, dr + 2 * d_state)),
        "dt_proj_w": nrm(keys[3], (dr, di)),
        "dt_proj_b": jnp.full((di,), 0.01, jnp.float32),
        "A_log": jnp.log(jnp.broadcast_to(
            jnp.arange(1, d_state + 1, dtype=jnp.float32), (di, d_state))),
        "D": jnp.ones((di,), jnp.float32),
        "out_proj_w": nrm(keys[4], (di, dim)),
    }


# -----------------------------------------------------------------------------
# Main
# -----------------------------------------------------------------------------
if __name__ == "__main__":
    key = jax.random.PRNGKey(0)
    kp, kx = jax.random.split(key)

    dim, d_state, d_conv, expand = 64, 16, 4, 2        # small RMB(dim=64)
    params = init_rmb_params(kp, dim, d_state, d_conv, expand)

    # (B, C, D, H, W) = (2, 64, 8, 8, 8)  -> L = 512 tokens
    x = jax.random.normal(kx, (2, dim, 8, 8, 8), jnp.float32)

    out = rmb_forward(x, params)
    out = jax.block_until_ready(out)

    assert out.shape == x.shape, (out.shape, x.shape)
    assert bool(jnp.all(jnp.isfinite(out)))
    print("KERNEL_OK")
</pallas_src>

<mosaic_0001>
module attributes {stable_mosaic.version = 11 : i64} {
  func.func @_ln_matmul_kernel(%arg0: i32, %arg1: memref<512x64xf32, #tpu.memory_space<vmem>>, %arg2: memref<1x64xf32, #tpu.memory_space<vmem>>, %arg3: memref<1x64xf32, #tpu.memory_space<vmem>>, %arg4: memref<64x256xbf16, #tpu.memory_space<vmem>>, %arg5: memref<512x256xf32, #tpu.memory_space<vmem>>) attributes {dimension_semantics = [#tpu.dimension_semantics<parallel>], iteration_bounds = array<i64: 2>, scalar_prefetch = 0 : i64, scratch_operands = 0 : i64, tpu.core_type = #tpu.core_type<tc>, window_params = [{transform_indices = @transform_0, window_bounds = array<i64: 512, 64>}, {pipeline_mode = #tpu.pipeline_mode<synchronous>, transform_indices = @transform_1, window_bounds = array<i64: 1, 64>}, {pipeline_mode = #tpu.pipeline_mode<synchronous>, transform_indices = @transform_2, window_bounds = array<i64: 1, 64>}, {pipeline_mode = #tpu.pipeline_mode<synchronous>, transform_indices = @transform_3, window_bounds = array<i64: 64, 256>}, {transform_indices = @transform_4, window_bounds = array<i64: 512, 256>}]} {
    %c0 = arith.constant 0 : index
    %c0_0 = arith.constant 0 : index
    %0 = vector.load %arg1[%c0, %c0_0] : memref<512x64xf32, #tpu.memory_space<vmem>>, vector<512x64xf32>
    %cst = arith.constant dense<0.000000e+00> : vector<512xf32>
    %1 = vector.multi_reduction <add>, %0, %cst [1] : vector<512x64xf32> to vector<512xf32>
    %2 = vector.shape_cast %1 : vector<512xf32> to vector<512x1xf32>
    %cst_1 = arith.constant 6.400000e+01 : f32
    %3 = vector.broadcast %cst_1 : f32 to vector<512x1xf32>
    %4 = arith.divf %2, %3 : vector<512x1xf32>
    %5 = vector.broadcast %4 : vector<512x1xf32> to vector<512x64xf32>
    %6 = arith.subf %0, %5 : vector<512x64xf32>
    %7 = arith.mulf %6, %6 : vector<512x64xf32>
    %cst_2 = arith.constant dense<0.000000e+00> : vector<512xf32>
    %8 = vector.multi_reduction <add>, %7, %cst_2 [1] : vector<512x64xf32> to vector<512xf32>
    %9 = vector.shape_cast %8 : vector<512xf32> to vector<512x1xf32>
    %cst_3 = arith.constant 6.400000e+01 : f32
    %10 = vector.broadcast %cst_3 : f32 to vector<512x1xf32>
    %11 = arith.divf %9, %10 : vector<512x1xf32>
    %12 = vector.broadcast %4 : vector<512x1xf32> to vector<512x64xf32>
    %13 = arith.subf %0, %12 : vector<512x64xf32>
    %cst_4 = arith.constant 9.99999974E-6 : f32
    %14 = vector.broadcast %cst_4 : f32 to vector<512x1xf32>
    %15 = arith.addf %11, %14 : vector<512x1xf32>
    %16 = math.rsqrt %15 : vector<512x1xf32>
    %17 = vector.broadcast %16 : vector<512x1xf32> to vector<512x64xf32>
    %18 = arith.mulf %13, %17 : vector<512x64xf32>
    %c0_5 = arith.constant 0 : index
    %c0_6 = arith.constant 0 : index
    %19 = vector.load %arg2[%c0_5, %c0_6] : memref<1x64xf32, #tpu.memory_space<vmem>>, vector<1x64xf32>
    %20 = vector.broadcast %19 : vector<1x64xf32> to vector<512x64xf32>
    %21 = arith.mulf %18, %20 : vector<512x64xf32>
    %c0_7 = arith.constant 0 : index
    %c0_8 = arith.constant 0 : index
    %22 = vector.load %arg3[%c0_7, %c0_8] : memref<1x64xf32, #tpu.memory_space<vmem>>, vector<1x64xf32>
    %23 = vector.broadcast %22 : vector<1x64xf32> to vector<512x64xf32>
    %24 = arith.addf %21, %23 : vector<512x64xf32>
    %25 = arith.truncf %24 : vector<512x64xf32> to vector<512x64xbf16>
    %c0_9 = arith.constant 0 : index
    %c0_10 = arith.constant 0 : index
    %26 = vector.load %arg4[%c0_9, %c0_10] : memref<64x256xbf16, #tpu.memory_space<vmem>>, vector<64x256xbf16>
    %cst_11 = arith.constant dense<0.000000e+00> : vector<512x256xf32>
    %27 = tpu.matmul %25, %26, %cst_11 {dimension_numbers = #tpu.dot_dimension_numbers<[1], [0], [0], [1], [0, 0, 1, 1], [], []>} : vector<512x64xbf16>, vector<64x256xbf16>, vector<512x256xf32> -> vector<512x256xf32>
    %c0_12 = arith.constant 0 : index
    %c0_13 = arith.constant 0 : index
    %28 = vector.load %arg5[%c0_12, %c0_13] : memref<512x256xf32, #tpu.memory_space<vmem>>, vector<512x256xf32>
    tpu.vector_store %arg5[%c0_12, %c0_13], %27 {strides = array<i32>} : memref<512x256xf32, #tpu.memory_space<vmem>>, vector<512x256xf32>,
    return
  }
  func.func @transform_0(%arg0: i32) -> (i32, i32) {
    %c0_i32 = arith.constant 0 : i32
    %c0_i32_0 = arith.constant 0 : i32
    return %arg0, %c0_i32 : i32, i32
  }
  func.func @transform_1(%arg0: i32) -> (i32, i32) {
    %c0_i32 = arith.constant 0 : i32
    %c0_i32_0 = arith.constant 0 : i32
    %c0_i32_1 = arith.constant 0 : i32
    return %c0_i32, %c0_i32_0 : i32, i32
  }
  func.func @transform_2(%arg0: i32) -> (i32, i32) {
    %c0_i32 = arith.constant 0 : i32
    %c0_i32_0 = arith.constant 0 : i32
    %c0_i32_1 = arith.constant 0 : i32
    return %c0_i32, %c0_i32_0 : i32, i32
  }
  func.func @transform_3(%arg0: i32) -> (i32, i32) {
    %c0_i32 = arith.constant 0 : i32
    %c0_i32_0 = arith.constant 0 : i32
    %c0_i32_1 = arith.constant 0 : i32
    return %c0_i32, %c0_i32_0 : i32, i32
  }
  func.func @transform_4(%arg0: i32) -> (i32, i32) {
    %c0_i32 = arith.constant 0 : i32
    %c0_i32_0 = arith.constant 0 : i32
    return %arg0, %c0_i32 : i32, i32
  }
}

</mosaic_0001>

<llo_original>
// kernel: tpu_custom_call.1
$region0: #{tpu_custom_call.1}
  #allocation0 [shape = 'u32[]', space=smem, size = 0x4, offset = 0x4, fixed_abs, tag = 'smem constant byte address 0x4 - core index']
  #allocation1 [shape = 'u32[144,128]{1,0:T(1,128)}', space=vmem, size = 0x12000, scoped, tag = 'internal scratch']
  %s0 = inlined_call_operand.vmem [shape: f32[1024,64], index: 0, kind: input, shape index: {}]
  %s1 = inlined_call_operand.vmem [shape: f32[1,64], index: 1, kind: input, shape index: {}]
  %s2 = inlined_call_operand.vmem [shape: f32[1,64], index: 2, kind: input, shape index: {}]
  %s3 = inlined_call_operand.vmem [shape: bf16[64,256], index: 3, kind: input, shape index: {}]
  %s4 = inlined_call_operand.hbm [shape: f32[1024,256], index: 4, kind: output, shape index: {}]
  %s5 = sld [smem:[#allocation0]]
  $region49: #{tpu_custom_call.1} parent=0
    _
  %s7 = ssub.s32 1, %s5
  %s8 = scalar_select 0, %s7, %s5
  $region1: #{tpu_custom_call.1} parent=0
    #allocation2 [shape = 'u8[1048576]{0}', space=vmem, size = 0x100000, scoped, tag = 'output window, operand 0']
    #allocation3 [shape = 's32[2]{0}', space=sflag, size = 0x8, scoped, tag = 'scoped memory for tpu_custom_call.1']
    %9 = vsyncpa [#allocation3], 0
    %s10 = scalar_lea.sflag [#allocation3], 1
    %11 = vsyncpa %s10, 0
    loop: start=0, step=1, limit=4
    $region2: #{tpu_custom_call.1} parent=1 // loop_pre_header
      _
    $region3: #{tpu_custom_call.1} parent=1 // loop_header
      %s13 = sphi 0, %s17
      %p14 = scmp.ge.s32.totalorder %s13, 4
      %s23 = sphi 0, %s25
      %s26 = sphi 0, %s23
      %s27 = sphi 0, %s26
      %s43 = sphi 0, %s27
      %s47 = sphi 0, %s47
      %s49 = sphi 0, %s47
      %s50 = sphi 0, %s49
      %s64 = sphi 0, %s50
      %s68 = sphi 0, %s68
      %s70 = sphi 0, %s68
      %s71 = sphi 0, %s70
      %s85 = sphi 0, %s71
      %s89 = sphi 0, %s89
      %s91 = sphi 0, %s89
      %s92 = sphi 0, %s91
      %s106 = sphi 0, %s92
      %s112 = sphi 0, %s114
      %s115 = sphi 0, %s112
      %s116 = sphi 0, %s115
      %s132 = sphi 0, %s116
    $region4: #{tpu_custom_call.1} parent=1 // loop_header_branch
      %16 = sbr.rel (%p14) target = $region8
    $region5: #{tpu_custom_call.1} parent=1 // loop_body
      %s18 = ssub.s32 %s13, 1
      %s19 = ssub.s32 %s13, 2
      %s20 = sadd.s32 %s13, 1
      %s21 = ssub.s32 %s13, %s20
      %p22 = scmp.eq.s32.totalorder %s21, 0
      %s24 = sadd.s32 %s23, 1
      %s25 = scalar_select %p22, %s23, %s24
      %p28 = pneg %p22
      %p29 = scmp.eq.s32.totalorder %s13, 1
      %p30 = por %p28, %p29
      %p31 = scmp.ne.s32.totalorder %s23, %s26
      %p32 = scmp.eq.s32.totalorder %s13, 0
      %p33 = por %p31, %p32
      %p34 = scmp.ne.s32.totalorder %s23, %s26
      %p35 = scmp.eq.s32.totalorder %s18, 1
      %p36 = por %p34, %p35
      %p37 = scmp.ne.s32.totalorder %s26, %s27
      %p38 = scmp.eq.s32.totalorder %s18, 0
      %p39 = por %p37, %p38
      %p40 = scmp.ne.s32.totalorder %s26, %s27
      %p41 = scmp.eq.s32.totalorder %s19, 1
      %p42 = por %p40, %p41
      %p44 = scmp.ne.s32.totalorder %s27, %s43
      %p45 = scmp.eq.s32.totalorder %s19, 0
      %p46 = por %p44, %p45
      %s48 = sadd.s32 %s47, 1
      %p51 = scmp.eq.s32.totalorder %s13, 1
      %p52 = scmp.ne.s32.totalorder %s47, %s49
      %p53 = scmp.eq.s32.totalorder %s13, 0
      %p54 = por %p52, %p53
      %p55 = scmp.ne.s32.totalorder %s47, %s49
      %p56 = scmp.eq.s32.totalorder %s18, 1
      %p57 = por %p55, %p56
      %p58 = scmp.ne.s32.totalorder %s49, %s50
      %p59 = scmp.eq.s32.totalorder %s18, 0
      %p60 = por %p58, %p59
      %p61 = scmp.ne.s32.totalorder %s49, %s50
      %p62 = scmp.eq.s32.totalorder %s19, 1
      %p63 = por %p61, %p62
      %p65 = scmp.ne.s32.totalorder %s50, %s64
      %p66 = scmp.eq.s32.totalorder %s19, 0
      %p67 = por %p65, %p66
      %s69 = sadd.s32 %s68, 1
      %p72 = scmp.eq.s32.totalorder %s13, 1
      %p73 = scmp.ne.s32.totalorder %s68, %s70
      %p74 = scmp.eq.s32.totalorder %s13, 0
      %p75 = por %p73, %p74
      %p76 = scmp.ne.s32.totalorder %s68, %s70
      %p77 = scmp.eq.s32.totalorder %s18, 1
      %p78 = por %p76, %p77
      %p79 = scmp.ne.s32.totalorder %s70, %s71
      %p80 = scmp.eq.s32.totalorder %s18, 0
      %p81 = por %p79, %p80
      %p82 = scmp.ne.s32.totalorder %s70, %s71
      %p83 = scmp.eq.s32.totalorder %s19, 1
      %p84 = por %p82, %p83
      %p86 = scmp.ne.s32.totalorder %s71, %s85
      %p87 = scmp.eq.s32.totalorder %s19, 0
      %p88 = por %p86, %p87
      %s90 = sadd.s32 %s89, 1
      %p93 = scmp.eq.s32.totalorder %s13, 1
      %p94 = scmp.ne.s32.totalorder %s89, %s91
      %p95 = scmp.eq.s32.totalorder %s13, 0
      %p96 = por %p94, %p95
      %p97 = scmp.ne.s32.totalorder %s89, %s91
      %p98 = scmp.eq.s32.totalorder %s18, 1
      %p99 = por %p97, %p98
      %p100 = scmp.ne.s32.totalorder %s91, %s92
      %p101 = scmp.eq.s32.totalorder %s18, 0
      %p102 = por %p100, %p101
      %p103 = scmp.ne.s32.totalorder %s91, %s92
      %p104 = scmp.eq.s32.totalorder %s19, 1
      %p105 = por %p103, %p104
      %p107 = scmp.ne.s32.totalorder %s92, %s106
      %p108 = scmp.eq.s32.totalorder %s19, 0
      %p109 = por %p107, %p108
      %s110 = ssub.s32 %s13, %s20
      %p111 = scmp.eq.s32.totalorder %s110, 0
      %s113 = sadd.s32 %s112, 1
      %s114 = scalar_select %p111, %s112, %s113
      %p117 = pneg %p111
      %p118 = scmp.eq.s32.totalorder %s13, 1
      %p119 = por %p117, %p118
      %p120 = scmp.ne.s32.totalorder %s112, %s115
      %p121 = scmp.eq.s32.totalorder %s13, 0
      %p122 = por %p120, %p121
      %p123 = scmp.ne.s32.totalorder %s112, %s115
      %p124 = scmp.eq.s32.totalorder %s18, 1
      %p125 = por %p123, %p124
      %p126 = scmp.ne.s32.totalorder %s115, %s116
      %p127 = scmp.eq.s32.totalorder %s18, 0
      %p128 = por %p126, %p127
      %p129 = scmp.ne.s32.totalorder %s115, %s116
      %p130 = scmp.eq.s32.totalorder %s19, 1
      %p131 = por %p129, %p130
      %p133 = scmp.ne.s32.totalorder %s116, %s132
      %p134 = scmp.eq.s32.totalorder %s19, 0
      %p135 = por %p133, %p134
      %p136 = scmp.le.s32.totalorder 1, %s13
      %p137 = scmp.lt.s32.totalorder %s13, 3
      %p138 = pnand %p136, %p137
      %p139 = pneg %p138
      // Predicated region
      $region9: #{tpu_custom_call.1} parent=5 // pred_check
        _
      $region10: #{tpu_custom_call.1} parent=5 // pred_check_branch
        %141 = sbr.rel (%p138) target = $region12
      $region11: #{tpu_custom_call.1} parent=5 // pred_region
        %s142 = ssub.s32 %s13, 1
        // Predicated region
        $region13: #{tpu_custom_call.1} parent=11 // pred_check
          %p143 = pneg %p60
        $region14: #{tpu_custom_call.1} parent=11 // pred_check_branch
          %145 = sbr.rel (%p143) target = $region16
        $region15: #{tpu_custom_call.1} parent=11 // pred_region
          _
        $region16: #{tpu_custom_call.1} parent=11 // pred_fallthru
          _
        // Predicated region
        $region17: #{tpu_custom_call.1} parent=11 // pred_check
          %p146 = pneg %p81
        $region18: #{tpu_custom_call.1} parent=11 // pred_check_branch
          %148 = sbr.rel (%p146) target = $region20
        $region19: #{tpu_custom_call.1} parent=11 // pred_region
          _
        $region20: #{tpu_custom_call.1} parent=11 // pred_fallthru
          _
        // Predicated region
        $region21: #{tpu_custom_call.1} parent=11 // pred_check
          %p149 = pneg %p102
        $region22: #{tpu_custom_call.1} parent=11 // pred_check_branch
          %151 = sbr.rel (%p149) target = $region24
        $region23: #{tpu_custom_call.1} parent=11 // pred_region
          _
        $region24: #{tpu_custom_call.1} parent=11 // pred_fallthru
          _
      $region12: #{tpu_custom_call.1} parent=5 // pred_fallthru
        _
      %p152 = scmp.lt.s32.totalorder %s13, 2
      // Predicated region
      $region25: #{tpu_custom_call.1} parent=5 // pred_check
        %p153 = pneg %p152
      $region26: #{tpu_custom_call.1} parent=5 // pred_check_branch
        %155 = sbr.rel (%p153) target = $region28
      $region27: #{tpu_custom_call.1} parent=5 // pred_region
        // Predicated region
        $region29: #{tpu_custom_call.1} parent=27 // pred_check
          %p156 = pneg %p33
        $region30: #{tpu_custom_call.1} parent=27 // pred_check_branch
          %158 = sbr.rel (%p156) target = $region32
        $region31: #{tpu_custom_call.1} parent=27 // pred_region
          %s159 = smul.u32 64, %s13
          %p160 = scmp.lt.s32.totalorder %s159, 127
          %s161 = scalar_select %p160, %s159, 127
          %s162 = smul.addr %s161, 8
          %s163 = scalar_lea.vmem %s0, %s162
          %s164 = smul.u32 64, %s13
        $region32: #{tpu_custom_call.1} parent=27 // pred_fallthru
          _
      $region28: #{tpu_custom_call.1} parent=5 // pred_fallthru
        _
      %p165 = scmp.le.s32.totalorder 1, %s13
      %p166 = scmp.lt.s32.totalorder %s13, 3
      %p167 = pnand %p165, %p166
      %p168 = pneg %p167
      // Predicated region
      $region33: #{tpu_custom_call.1} parent=5 // pred_check
        _
      $region34: #{tpu_custom_call.1} parent=5 // pred_check_branch
        %170 = sbr.rel (%p167) target = $region36
      $region35: #{tpu_custom_call.1} parent=5 // pred_region
        %s171 = ssub.s32 %s13, 1
        %s172 = smul.u32 64, %s18
        %p173 = scmp.lt.s32.totalorder %s172, 127
        %s174 = scalar_select %p173, %s172, 127
        %s175 = smul.addr %s174, 8
        %s176 = scalar_lea.vmem %s0, %s175
        %p177 = pneg %p39
        %p178 = pneg %p36
        %p179 = pneg %p60
        %p180 = pneg %p57
        %p181 = pneg %p81
        %p182 = pneg %p78
        %p183 = pneg %p102
        %p184 = pneg %p99
        %p185 = pneg %p128
        %p186 = pneg %p125
        %s187 = sand.u32 %s115, 1
        %s188 = scalar_lea.sflag [#allocation3], %s187
        %s189 = sand.u32 %s115, 1
        %s190 = smul.addr %s189, 1024
        %s191 = scalar_lea.vmem [#allocation2], %s190
        %s192 = smul.u32 64, %s18
        %p193 = scmp.lt.s32.totalorder %s192, 127
        %s194 = scalar_select %p193, %s192, 127
        %s195 = smul.addr %s194, 8
        %s196 = scalar_lea.vmem %s0, %s195
        %s197 = smul.u32 64, %s18
        %s198 = smul.u32 64, %s18
        %v200 = vld [vmem:[%s196] sm:$0xff]
        %v201 = vld [vmem:[%s196 + $0x8] sm:$0xff]
        %v202 = vld [vmem:[%s196 + $0x10] sm:$0xff]
        %v203 = vld [vmem:[%s196 + $0x18] sm:$0xff]
        %v204 = vld [vmem:[%s196 + $0x20] sm:$0xff]
        %v205 = vld [vmem:[%s196 + $0x28] sm:$0xff]
        %v206 = vld [vmem:[%s196 + $0x30] sm:$0xff]
        %v207 = vld [vmem:[%s196 + $0x38] sm:$0xff]
        %v208 = vld [vmem:[%s196 + $0x40] sm:$0xff]
        %v209 = vld [vmem:[%s196 + $0x48] sm:$0xff]
        %v210 = vld [vmem:[%s196 + $0x50] sm:$0xff]
        %v211 = vld [vmem:[%s196 + $0x58] sm:$0xff]
        %v212 = vld [vmem:[%s196 + $0x60] sm:$0xff]
        %v213 = vld [vmem:[%s196 + $0x68] sm:$0xff]
        %v214 = vld [vmem:[%s196 + $0x70] sm:$0xff]
        %v215 = vld [vmem:[%s196 + $0x78] sm:$0xff]
        %v216 = vld [vmem:[%s196 + $0x80] sm:$0xff]
        %v217 = vld [vmem:[%s196 + $0x88] sm:$0xff]
        %v218 = vld [vmem:[%s196 + $0x90] sm:$0xff]
        %v219 = vld [vmem:[%s196 + $0x98] sm:$0xff]
        %v220 = vld [vmem:[%s196 + $0xa0] sm:$0xff]
        %v221 = vld [vmem:[%s196 + $0xa8] sm:$0xff]
        %v222 = vld [vmem:[%s196 + $0xb0] sm:$0xff]
        %v223 = vld [vmem:[%s196 + $0xb8] sm:$0xff]
        %v224 = vld [vmem:[%s196 + $0xc0] sm:$0xff]
        %v225 = vld [vmem:[%s196 + $0xc8] sm:$0xff]
        %v226 = vld [vmem:[%s196 + $0xd0] sm:$0xff]
        %v227 = vld [vmem:[%s196 + $0xd8] sm:$0xff]
        %v228 = vld [vmem:[%s196 + $0xe0] sm:$0xff]
        %v229 = vld [vmem:[%s196 + $0xe8] sm:$0xff]
        %v230 = vld [vmem:[%s196 + $0xf0] sm:$0xff]
        %v231 = vld [vmem:[%s196 + $0xf8] sm:$0xff]
        %v232 = vld [vmem:[%s196 + $0x100] sm:$0xff]
        %v233 = vld [vmem:[%s196 + $0x108] sm:$0xff]
        %v234 = vld [vmem:[%s196 + $0x110] sm:$0xff]
        %v235 = vld [vmem:[%s196 + $0x118] sm:$0xff]
        %v236 = vld [vmem:[%s196 + $0x120] sm:$0xff]
        %v237 = vld [vmem:[%s196 + $0x128] sm:$0xff]
        %v238 = vld [vmem:[%s196 + $0x130] sm:$0xff]
        %v239 = vld [vmem:[%s196 + $0x138] sm:$0xff]
        %v240 = vld [vmem:[%s196 + $0x140] sm:$0xff]
        %v241 = vld [vmem:[%s196 + $0x148] sm:$0xff]
        %v242 = vld [vmem:[%s196 + $0x150] sm:$0xff]
        %v243 = vld [vmem:[%s196 + $0x158] sm:$0xff]
        %v244 = vld [vmem:[%s196 + $0x160] sm:$0xff]
        %v245 = vld [vmem:[%s196 + $0x168] sm:$0xff]
        %v246 = vld [vmem:[%s196 + $0x170] sm:$0xff]
        %v247 = vld [vmem:[%s196 + $0x178] sm:$0xff]
        %v248 = vld [vmem:[%s196 + $0x180] sm:$0xff]
        %v249 = vld [vmem:[%s196 + $0x188] sm:$0xff]
        %v250 = vld [vmem:[%s196 + $0x190] sm:$0xff]
        %v251 = vld [vmem:[%s196 + $0x198] sm:$0xff]
        %v252 = vld [vmem:[%s196 + $0x1a0] sm:$0xff]
        %v253 = vld [vmem:[%s196 + $0x1a8] sm:$0xff]
        %v254 = vld [vmem:[%s196 + $0x1b0] sm:$0xff]
        %v255 = vld [vmem:[%s196 + $0x1b8] sm:$0xff]
        %v256 = vld [vmem:[%s196 + $0x1c0] sm:$0xff]
        %v257 = vld [vmem:[%s196 + $0x1c8] sm:$0xff]
        %v258 = vld [vmem:[%s196 + $0x1d0] sm:$0xff]
        %v259 = vld [vmem:[%s196 + $0x1d8] sm:$0xff]
        %v260 = vld [vmem:[%s196 + $0x1e0] sm:$0xff]
        %v261 = vld [vmem:[%s196 + $0x1e8] sm:$0xff]
        %v262 = vld [vmem:[%s196 + $0x1f0] sm:$0xff]
        %v263 = vld [vmem:[%s196 + $0x1f8] sm:$0xff]
        %vm264 = vcmask 523264
        %v265 = vsel %vm264, %v200, 0.0
        %266 = vadd.xlane.f32.xlu0 %v265
        %v267 = vpop.xlane.xlu0 %266
        %v268 = vsel %vm264, %v201, 0.0
        %269 = vadd.xlane.f32.xlu0 %v268
        %v270 = vpop.xlane.xlu0 %269
        %v271 = vsel %vm264, %v202, 0.0
        %272 = vadd.xlane.f32.xlu0 %v271
        %v273 = vpop.xlane.xlu0 %272
        %v274 = vsel %vm264, %v203, 0.0
        %275 = vadd.xlane.f32.xlu0 %v274
        %v276 = vpop.xlane.xlu0 %275
        %v277 = vsel %vm264, %v204, 0.0
        %278 = vadd.xlane.f32.xlu0 %v277
        %v279 = vpop.xlane.xlu0 %278
        %v280 = vsel %vm264, %v205, 0.0
        %281 = vadd.xlane.f32.xlu0 %v280
        %v282 = vpop.xlane.xlu0 %281
        %v283 = vsel %vm264, %v206, 0.0
        %284 = vadd.xlane.f32.xlu0 %v283
        %v285 = vpop.xlane.xlu0 %284
        %v286 = vsel %vm264, %v207, 0.0
        %287 = vadd.xlane.f32.xlu0 %v286
        %v288 = vpop.xlane.xlu0 %287
        %v289 = vsel %vm264, %v208, 0.0
        %290 = vadd.xlane.f32.xlu0 %v289
        %v291 = vpop.xlane.xlu0 %290
        %v292 = vsel %vm264, %v209, 0.0
        %293 = vadd.xlane.f32.xlu0 %v292
        %v294 = vpop.xlane.xlu0 %293
        %v295 = vsel %vm264, %v210, 0.0
        %296 = vadd.xlane.f32.xlu0 %v295
        %v297 = vpop.xlane.xlu0 %296
        %v298 = vsel %vm264, %v211, 0.0
        %299 = vadd.xlane.f32.xlu0 %v298
        %v300 = vpop.xlane.xlu0 %299
        %v301 = vsel %vm264, %v212, 0.0
        %302 = vadd.xlane.f32.xlu0 %v301
        %v303 = vpop.xlane.xlu0 %302
        %v304 = vsel %vm264, %v213, 0.0
        %305 = vadd.xlane.f32.xlu0 %v304
        %v306 = vpop.xlane.xlu0 %305
        %v307 = vsel %vm264, %v214, 0.0
        %308 = vadd.xlane.f32.xlu0 %v307
        %v309 = vpop.xlane.xlu0 %308
        %v310 = vsel %vm264, %v215, 0.0
        %311 = vadd.xlane.f32.xlu0 %v310
        %v312 = vpop.xlane.xlu0 %311
        %v313 = vsel %vm264, %v216, 0.0
        %314 = vadd.xlane.f32.xlu0 %v313
        %v315 = vpop.xlane.xlu0 %314
        %v316 = vsel %vm264, %v217, 0.0
        %317 = vadd.xlane.f32.xlu0 %v316
        %v318 = vpop.xlane.xlu0 %317
        %v319 = vsel %vm264, %v218, 0.0
        %320 = vadd.xlane.f32.xlu0 %v319
        %v321 = vpop.xlane.xlu0 %320
        %v322 = vsel %vm264, %v219, 0.0
        %323 = vadd.xlane.f32.xlu0 %v322
        %v324 = vpop.xlane.xlu0 %323
        %v325 = vsel %vm264, %v220, 0.0
        %326 = vadd.xlane.f32.xlu0 %v325
        %v327 = vpop.xlane.xlu0 %326
        %v328 = vsel %vm264, %v221, 0.0
        %329 = vadd.xlane.f32.xlu0 %v328
        %v330 = vpop.xlane.xlu0 %329
        %v331 = vsel %vm264, %v222, 0.0
        %332 = vadd.xlane.f32.xlu0 %v331
        %v333 = vpop.xlane.xlu0 %332
        %v334 = vsel %vm264, %v223, 0.0
        %335 = vadd.xlane.f32.xlu0 %v334
        %v336 = vpop.xlane.xlu0 %335
        %v337 = vsel %vm264, %v224, 0.0
        %338 = vadd.xlane.f32.xlu0 %v337
        %v339 = vpop.xlane.xlu0 %338
        %v340 = vsel %vm264, %v225, 0.0
        %341 = vadd.xlane.f32.xlu0 %v340
        %v342 = vpop.xlane.xlu0 %341
        %v343 = vsel %vm264, %v226, 0.0
        %344 = vadd.xlane.f32.xlu0 %v343
        %v345 = vpop.xlane.xlu0 %344
        %v346 = vsel %vm264, %v227, 0.0
        %347 = vadd.xlane.f32.xlu0 %v346
        %v348 = vpop.xlane.xlu0 %347
        %v349 = vsel %vm264, %v228, 0.0
        %350 = vadd.xlane.f32.xlu0 %v349
        %v351 = vpop.xlane.xlu0 %350
        %v352 = vsel %vm264, %v229, 0.0
        %353 = vadd.xlane.f32.xlu0 %v352
        %v354 = vpop.xlane.xlu0 %353
        %v355 = vsel %vm264, %v230, 0.0
        %356 = vadd.xlane.f32.xlu0 %v355
        %v357 = vpop.xlane.xlu0 %356
        %v358 = vsel %vm264, %v231, 0.0
        %359 = vadd.xlane.f32.xlu0 %v358
        %v360 = vpop.xlane.xlu0 %359
        %v361 = vsel %vm264, %v232, 0.0
        %362 = vadd.xlane.f32.xlu0 %v361
        %v363 = vpop.xlane.xlu0 %362
        %v364 = vsel %vm264, %v233, 0.0
        %365 = vadd.xlane.f32.xlu0 %v364
        %v366 = vpop.xlane.xlu0 %365
        %v367 = vsel %vm264, %v234, 0.0
        %368 = vadd.xlane.f32.xlu0 %v367
        %v369 = vpop.xlane.xlu0 %368
        %v370 = vsel %vm264, %v235, 0.0
        %371 = vadd.xlane.f32.xlu0 %v370
        %v372 = vpop.xlane.xlu0 %371
        %v373 = vsel %vm264, %v236, 0.0
        %374 = vadd.xlane.f32.xlu0 %v373
        %v375 = vpop.xlane.xlu0 %374
        %v376 = vsel %vm264, %v237, 0.0
        %377 = vadd.xlane.f32.xlu0 %v376
        %v378 = vpop.xlane.xlu0 %377
        %v379 = vsel %vm264, %v238, 0.0
        %380 = vadd.xlane.f32.xlu0 %v379
        %v381 = vpop.xlane.xlu0 %380
        %v382 = vsel %vm264, %v239, 0.0
        %383 = vadd.xlane.f32.xlu0 %v382
        %v384 = vpop.xlane.xlu0 %383
        %v385 = vsel %vm264, %v240, 0.0
        %386 = vadd.xlane.f32.xlu0 %v385
        %v387 = vpop.xlane.xlu0 %386
        %v388 = vsel %vm264, %v241, 0.0
        %389 = vadd.xlane.f32.xlu0 %v388
        %v390 = vpop.xlane.xlu0 %389
        %v391 = vsel %vm264, %v242, 0.0
        %392 = vadd.xlane.f32.xlu0 %v391
        %v393 = vpop.xlane.xlu0 %392
        %v394 = vsel %vm264, %v243, 0.0
        %395 = vadd.xlane.f32.xlu0 %v394
        %v396 = vpop.xlane.xlu0 %395
        %v397 = vsel %vm264, %v244, 0.0
        %398 = vadd.xlane.f32.xlu0 %v397
        %v399 = vpop.xlane.xlu0 %398
        %v400 = vsel %vm264, %v245, 0.0
        %401 = vadd.xlane.f32.xlu0 %v400
        %v402 = vpop.xlane.xlu0 %401
        %v403 = vsel %vm264, %v246, 0.0
        %404 = vadd.xlane.f32.xlu0 %v403
        %v405 = vpop.xlane.xlu0 %404
        %v406 = vsel %vm264, %v247, 0.0
        %407 = vadd.xlane.f32.xlu0 %v406
        %v408 = vpop.xlane.xlu0 %407
        %v409 = vsel %vm264, %v248, 0.0
        %410 = vadd.xlane.f32.xlu0 %v409
        %v411 = vpop.xlane.xlu0 %410
        %v412 = vsel %vm264, %v249, 0.0
        %413 = vadd.xlane.f32.xlu0 %v412
        %v414 = vpop.xlane.xlu0 %413
        %v415 = vsel %vm264, %v250, 0.0
        %416 = vadd.xlane.f32.xlu0 %v415
        %v417 = vpop.xlane.xlu0 %416
        %v418 = vsel %vm264, %v251, 0.0
        %419 = vadd.xlane.f32.xlu0 %v418
        %v420 = vpop.xlane.xlu0 %419
        %v421 = vsel %vm264, %v252, 0.0
        %422 = vadd.xlane.f32.xlu0 %v421
        %v423 = vpop.xlane.xlu0 %422
        %v424 = vsel %vm264, %v253, 0.0
        %425 = vadd.xlane.f32.xlu0 %v424
        %v426 = vpop.xlane.xlu0 %425
        %v427 = vsel %vm264, %v254, 0.0
        %428 = vadd.xlane.f32.xlu0 %v427
        %v429 = vpop.xlane.xlu0 %428
        %v430 = vsel %vm264, %v255, 0.0
        %431 = vadd.xlane.f32.xlu0 %v430
        %v432 = vpop.xlane.xlu0 %431
        %v433 = vsel %vm264, %v256, 0.0
        %434 = vadd.xlane.f32.xlu0 %v433
        %v435 = vpop.xlane.xlu0 %434
        %v436 = vsel %vm264, %v257, 0.0
        %437 = vadd.xlane.f32.xlu0 %v436
        %v438 = vpop.xlane.xlu0 %437
        %v439 = vsel %vm264, %v258, 0.0
        %440 = vadd.xlane.f32.xlu0 %v439
        %v441 = vpop.xlane.xlu0 %440
        %v442 = vsel %vm264, %v259, 0.0
        %443 = vadd.xlane.f32.xlu0 %v442
        %v444 = vpop.xlane.xlu0 %443
        %v445 = vsel %vm264, %v260, 0.0
        %446 = vadd.xlane.f32.xlu0 %v445
        %v447 = vpop.xlane.xlu0 %446
        %v448 = vsel %vm264, %v261, 0.0
        %449 = vadd.xlane.f32.xlu0 %v448
        %v450 = vpop.xlane.xlu0 %449
        %v451 = vsel %vm264, %v262, 0.0
        %452 = vadd.xlane.f32.xlu0 %v451
        %v453 = vpop.xlane.xlu0 %452
        %v454 = vsel %vm264, %v263, 0.0
        %455 = vadd.xlane.f32.xlu0 %v454
        %v456 = vpop.xlane.xlu0 %455
        %v457 = vrcp.pop 64.0
        %v458 = vmul.f32 %v267, %v457
        %v459 = vmul.f32 %v270, %v457
        %v460 = vmul.f32 %v273, %v457
        %v461 = vmul.f32 %v276, %v457
        %v462 = vmul.f32 %v279, %v457
        %v463 = vmul.f32 %v282, %v457
        %v464 = vmul.f32 %v285, %v457
        %v465 = vmul.f32 %v288, %v457
        %v466 = vmul.f32 %v291, %v457
        %v467 = vmul.f32 %v294, %v457
        %v468 = vmul.f32 %v297, %v457
        %v469 = vmul.f32 %v300, %v457
        %v470 = vmul.f32 %v303, %v457
        %v471 = vmul.f32 %v306, %v457
        %v472 = vmul.f32 %v309, %v457
        %v473 = vmul.f32 %v312, %v457
        %v474 = vmul.f32 %v315, %v457
        %v475 = vmul.f32 %v318, %v457
        %v476 = vmul.f32 %v321, %v457
        %v477 = vmul.f32 %v324, %v457
        %v478 = vmul.f32 %v327, %v457
        %v479 = vmul.f32 %v330, %v457
        %v480 = vmul.f32 %v333, %v457
        %v481 = vmul.f32 %v336, %v457
        %v482 = vmul.f32 %v339, %v457
        %v483 = vmul.f32 %v342, %v457
        %v484 = vmul.f32 %v345, %v457
        %v485 = vmul.f32 %v348, %v457
        %v486 = vmul.f32 %v351, %v457
        %v487 = vmul.f32 %v354, %v457
        %v488 = vmul.f32 %v357, %v457
        %v489 = vmul.f32 %v360, %v457
        %v490 = vmul.f32 %v363, %v457
        %v491 = vmul.f32 %v366, %v457
        %v492 = vmul.f32 %v369, %v457
        %v493 = vmul.f32 %v372, %v457
        %v494 = vmul.f32 %v375, %v457
        %v495 = vmul.f32 %v378, %v457
        %v496 = vmul.f32 %v381, %v457
        %v497 = vmul.f32 %v384, %v457
        %v498 = vmul.f32 %v387, %v457
        %v499 = vmul.f32 %v390, %v457
        %v500 = vmul.f32 %v393, %v457
        %v501 = vmul.f32 %v396, %v457
        %v502 = vmul.f32 %v399, %v457
        %v503 = vmul.f32 %v402, %v457
        %v504 = vmul.f32 %v405, %v457
        %v505 = vmul.f32 %v408, %v457
        %v506 = vmul.f32 %v411, %v457
        %v507 = vmul.f32 %v414, %v457
        %v508 = vmul.f32 %v417, %v457
        %v509 = vmul.f32 %v420, %v457
        %v510 = vmul.f32 %v423, %v457
        %v511 = vmul.f32 %v426, %v457
        %v512 = vmul.f32 %v429, %v457
        %v513 = vmul.f32 %v432, %v457
        %v514 = vmul.f32 %v435, %v457
        %v515 = vmul.f32 %v438, %v457
        %v516 = vmul.f32 %v441, %v457
        %v517 = vmul.f32 %v444, %v457
        %v518 = vmul.f32 %v447, %v457
        %v519 = vmul.f32 %v450, %v457
        %v520 = vmul.f32 %v453, %v457
        %v521 = vmul.f32 %v456, %v457
        %v522 = vsub.f32 %v200, %v458
        %v523 = vsub.f32 %v201, %v459
        %v524 = vsub.f32 %v202, %v460
        %v525 = vsub.f32 %v203, %v461
        %v526 = vsub.f32 %v204, %v462
        %v527 = vsub.f32 %v205, %v463
        %v528 = vsub.f32 %v206, %v464
        %v529 = vsub.f32 %v207, %v465
        %v530 = vsub.f32 %v208, %v466
        %v531 = vsub.f32 %v209, %v467
        %v532 = vsub.f32 %v210, %v468
        %v533 = vsub.f32 %v211, %v469
        %v534 = vsub.f32 %v212, %v470
        %v535 = vsub.f32 %v213, %v471
        %v536 = vsub.f32 %v214, %v472
        %v537 = vsub.f32 %v215, %v473
        %v538 = vsub.f32 %v216, %v474
        %v539 = vsub.f32 %v217, %v475
        %v540 = vsub.f32 %v218, %v476
        %v541 = vsub.f32 %v219, %v477
        %v542 = vsub.f32 %v220, %v478
        %v543 = vsub.f32 %v221, %v479
        %v544 = vsub.f32 %v222, %v480
        %v545 = vsub.f32 %v223, %v481
        %v546 = vsub.f32 %v224, %v482
        %v547 = vsub.f32 %v225, %v483
        %v548 = vsub.f32 %v226, %v484
        %v549 = vsub.f32 %v227, %v485
        %v550 = vsub.f32 %v228, %v486
        %v551 = vsub.f32 %v229, %v487
        %v552 = vsub.f32 %v230, %v488
        %v553 = vsub.f32 %v231, %v489
        %v554 = vsub.f32 %v232, %v490
        %v555 = vsub.f32 %v233, %v491
        %v556 = vsub.f32 %v234, %v492
        %v557 = vsub.f32 %v235, %v493
        %v558 = vsub.f32 %v236, %v494
        %v559 = vsub.f32 %v237, %v495
        %v560 = vsub.f32 %v238, %v496
        %v561 = vsub.f32 %v239, %v497
        %v562 = vsub.f32 %v240, %v498
        %v563 = vsub.f32 %v241, %v499
        %v564 = vsub.f32 %v242, %v500
        %v565 = vsub.f32 %v243, %v501
        %v566 = vsub.f32 %v244, %v502
        %v567 = vsub.f32 %v245, %v503
        %v568 = vsub.f32 %v246, %v504
        %v569 = vsub.f32 %v247, %v505
        %v570 = vsub.f32 %v248, %v506
        %v571 = vsub.f32 %v249, %v507
        %v572 = vsub.f32 %v250, %v508
        %v573 = vsub.f32 %v251, %v509
        %v574 = vsub.f32 %v252, %v510
        %v575 = vsub.f32 %v253, %v511
        %v576 = vsub.f32 %v254, %v512
        %v577 = vsub.f32 %v255, %v513
        %v578 = vsub.f32 %v256, %v514
        %v579 = vsub.f32 %v257, %v515
        %v580 = vsub.f32 %v258, %v516
        %v581 = vsub.f32 %v259, %v517
        %v582 = vsub.f32 %v260, %v518
        %v583 = vsub.f32 %v261, %v519
        %v584 = vsub.f32 %v262, %v520
        %v585 = vsub.f32 %v263, %v521
        %v586 = vmul.f32 %v522, %v522
        %v587 = vmul.f32 %v523, %v523
        %v588 = vmul.f32 %v524, %v524
        %v589 = vmul.f32 %v525, %v525
        %v590 = vmul.f32 %v526, %v526
        %v591 = vmul.f32 %v527, %v527
        %v592 = vmul.f32 %v528, %v528
        %v593 = vmul.f32 %v529, %v529
        %v594 = vmul.f32 %v530, %v530
        %v595 = vmul.f32 %v531, %v531
        %v596 = vmul.f32 %v532, %v532
        %v597 = vmul.f32 %v533, %v533
        %v598 = vmul.f32 %v534, %v534
        %v599 = vmul.f32 %v535, %v535
        %v600 = vmul.f32 %v536, %v536
        %v601 = vmul.f32 %v537, %v537
        %v602 = vmul.f32 %v538, %v538
        %v603 = vmul.f32 %v539, %v539
        %v604 = vmul.f32 %v540, %v540
        %v605 = vmul.f32 %v541, %v541
        %v606 = vmul.f32 %v542, %v542
        %v607 = vmul.f32 %v543, %v543
        %v608 = vmul.f32 %v544, %v544
        %v609 = vmul.f32 %v545, %v545
        %v610 = vmul.f32 %v546, %v546
        %v611 = vmul.f32 %v547, %v547
        %v612 = vmul.f32 %v548, %v548
        %v613 = vmul.f32 %v549, %v549
        %v614 = vmul.f32 %v550, %v550
        %v615 = vmul.f32 %v551, %v551
        %v616 = vmul.f32 %v552, %v552
        %v617 = vmul.f32 %v553, %v553
        %v618 = vmul.f32 %v554, %v554
        %v619 = vmul.f32 %v555, %v555
        %v620 = vmul.f32 %v556, %v556
        %v621 = vmul.f32 %v557, %v557
        %v622 = vmul.f32 %v558, %v558
        %v623 = vmul.f32 %v559, %v559
        %v624 = vmul.f32 %v560, %v560
        %v625 = vmul.f32 %v561, %v561
        %v626 = vmul.f32 %v562, %v562
        %v627 = vmul.f32 %v563, %v563
        %v628 = vmul.f32 %v564, %v564
        %v629 = vmul.f32 %v565, %v565
        %v630 = vmul.f32 %v566, %v566
        %v631 = vmul.f32 %v567, %v567
        %v632 = vmul.f32 %v568, %v568
        %v633 = vmul.f32 %v569, %v569
        %v634 = vmul.f32 %v570, %v570
        %v635 = vmul.f32 %v571, %v571
        %v636 = vmul.f32 %v572, %v572
        %v637 = vmul.f32 %v573, %v573
        %v638 = vmul.f32 %v574, %v574
        %v639 = vmul.f32 %v575, %v575
        %v640 = vmul.f32 %v576, %v576
        %v641 = vmul.f32 %v577, %v577
        %v642 = vmul.f32 %v578, %v578
        %v643 = vmul.f32 %v579, %v579
        %v644 = vmul.f32 %v580, %v580
        %v645 = vmul.f32 %v581, %v581
        %v646 = vmul.f32 %v582, %v582
        %v647 = vmul.f32 %v583, %v583
        %v648 = vmul.f32 %v584, %v584
        %v649 = vmul.f32 %v585, %v585
        %v650 = vsel %vm264, %v586, 0.0
        %651 = vadd.xlane.f32.xlu0 %v650
        %v652 = vpop.xlane.xlu0 %651
        %v653 = vsel %vm264, %v587, 0.0
        %654 = vadd.xlane.f32.xlu0 %v653
        %v655 = vpop.xlane.xlu0 %654
        %v656 = vsel %vm264, %v588, 0.0
        %657 = vadd.xlane.f32.xlu0 %v656
        %v658 = vpop.xlane.xlu0 %657
        %v659 = vsel %vm264, %v589, 0.0
        %660 = vadd.xlane.f32.xlu0 %v659
        %v661 = vpop.xlane.xlu0 %660
        %v662 = vsel %vm264, %v590, 0.0
        %663 = vadd.xlane.f32.xlu0 %v662
        %v664 = vpop.xlane.xlu0 %663
        %v665 = vsel %vm264, %v591, 0.0
        %666 = vadd.xlane.f32.xlu0 %v665
        %v667 = vpop.xlane.xlu0 %666
        %v668 = vsel %vm264, %v592, 0.0
        %669 = vadd.xlane.f32.xlu0 %v668
        %v670 = vpop.xlane.xlu0 %669
        %v671 = vsel %vm264, %v593, 0.0
        %672 = vadd.xlane.f32.xlu0 %v671
        %v673 = vpop.xlane.xlu0 %672
        %v674 = vsel %vm264, %v594, 0.0
        %675 = vadd.xlane.f32.xlu0 %v674
        %v676 = vpop.xlane.xlu0 %675
        %v677 = vsel %vm264, %v595, 0.0
        %678 = vadd.xlane.f32.xlu0 %v677
        %v679 = vpop.xlane.xlu0 %678
        %v680 = vsel %vm264, %v596, 0.0
        %681 = vadd.xlane.f32.xlu0 %v680
        %v682 = vpop.xlane.xlu0 %681
        %v683 = vsel %vm264, %v597, 0.0
        %684 = vadd.xlane.f32.xlu0 %v683
        %v685 = vpop.xlane.xlu0 %684
        %v686 = vsel %vm264, %v598, 0.0
        %687 = vadd.xlane.f32.xlu0 %v686
        %v688 = vpop.xlane.xlu0 %687
        %v689 = vsel %vm264, %v599, 0.0
        %690 = vadd.xlane.f32.xlu0 %v689
        %v691 = vpop.xlane.xlu0 %690
        %v692 = vsel %vm264, %v600, 0.0
        %693 = vadd.xlane.f32.xlu0 %v692
        %v694 = vpop.xlane.xlu0 %693
        %v695 = vsel %vm264, %v601, 0.0
        %696 = vadd.xlane.f32.xlu0 %v695
        %v697 = vpop.xlane.xlu0 %696
        %v698 = vsel %vm264, %v602, 0.0
        %699 = vadd.xlane.f32.xlu0 %v698
        %v700 = vpop.xlane.xlu0 %699
        %v701 = vsel %vm264, %v603, 0.0
        %702 = vadd.xlane.f32.xlu0 %v701
        %v703 = vpop.xlane.xlu0 %702
        %v704 = vsel %vm264, %v604, 0.0
        %705 = vadd.xlane.f32.xlu0 %v704
        %v706 = vpop.xlane.xlu0 %705
        %v707 = vsel %vm264, %v605, 0.0
        %708 = vadd.xlane.f32.xlu0 %v707
        %v709 = vpop.xlane.xlu0 %708
        %v710 = vsel %vm264, %v606, 0.0
        %711 = vadd.xlane.f32.xlu0 %v710
        %v712 = vpop.xlane.xlu0 %711
        %v713 = vsel %vm264, %v607, 0.0
        %714 = vadd.xlane.f32.xlu0 %v713
        %v715 = vpop.xlane.xlu0 %714
        %v716 = vsel %vm264, %v608, 0.0
        %717 = vadd.xlane.f32.xlu0 %v716
        %v718 = vpop.xlane.xlu0 %717
        %v719 = vsel %vm264, %v609, 0.0
        %720 = vadd.xlane.f32.xlu0 %v719
        %v721 = vpop.xlane.xlu0 %720
        %v722 = vsel %vm264, %v610, 0.0
        %723 = vadd.xlane.f32.xlu0 %v722
        %v724 = vpop.xlane.xlu0 %723
        %v725 = vsel %vm264, %v611, 0.0
        %726 = vadd.xlane.f32.xlu0 %v725
        %v727 = vpop.xlane.xlu0 %726
        %v728 = vsel %vm264, %v612, 0.0
        %729 = vadd.xlane.f32.xlu0 %v728
        %v730 = vpop.xlane.xlu0 %729
        %v731 = vsel %vm264, %v613, 0.0
        %732 = vadd.xlane.f32.xlu0 %v731
        %v733 = vpop.xlane.xlu0 %732
        %v734 = vsel %vm264, %v614, 0.0
        %735 = vadd.xlane.f32.xlu0 %v734
        %v736 = vpop.xlane.xlu0 %735
        %v737 = vsel %vm264, %v615, 0.0
        %738 = vadd.xlane.f32.xlu0 %v737
        %v739 = vpop.xlane.xlu0 %738
        %v740 = vsel %vm264, %v616, 0.0
        %741 = vadd.xlane.f32.xlu0 %v740
        %v742 = vpop.xlane.xlu0 %741
        %v743 = vsel %vm264, %v617, 0.0
        %744 = vadd.xlane.f32.xlu0 %v743
        %v745 = vpop.xlane.xlu0 %744
        %v746 = vsel %vm264, %v618, 0.0
        %747 = vadd.xlane.f32.xlu0 %v746
        %v748 = vpop.xlane.xlu0 %747
        %v749 = vsel %vm264, %v619, 0.0
        %750 = vadd.xlane.f32.xlu0 %v749
        %v751 = vpop.xlane.xlu0 %750
        %v752 = vsel %vm264, %v620, 0.0
        %753 = vadd.xlane.f32.xlu0 %v752
        %v754 = vpop.xlane.xlu0 %753
        %v755 = vsel %vm264, %v621, 0.0
        %756 = vadd.xlane.f32.xlu0 %v755
        %v757 = vpop.xlane.xlu0 %756
        %v758 = vsel %vm264, %v622, 0.0
        %759 = vadd.xlane.f32.xlu0 %v758
        %v760 = vpop.xlane.xlu0 %759
        %v761 = vsel %vm264, %v623, 0.0
        %762 = vadd.xlane.f32.xlu0 %v761
        %v763 = vpop.xlane.xlu0 %762
        %v764 = vsel %vm264, %v624, 0.0
        %765 = vadd.xlane.f32.xlu0 %v764
        %v766 = vpop.xlane.xlu0 %765
        %v767 = vsel %vm264, %v625, 0.0
        %768 = vadd.xlane.f32.xlu0 %v767
        %v769 = vpop.xlane.xlu0 %768
        %v770 = vsel %vm264, %v626, 0.0
        %771 = vadd.xlane.f32.xlu0 %v770
        %v772 = vpop.xlane.xlu0 %771
        %v773 = vsel %vm264, %v627, 0.0
        %774 = vadd.xlane.f32.xlu0 %v773
        %v775 = vpop.xlane.xlu0 %774
        %v776 = vsel %vm264, %v628, 0.0
        %777 = vadd.xlane.f32.xlu0 %v776
        %v778 = vpop.xlane.xlu0 %777
        %v779 = vsel %vm264, %v629, 0.0
        %780 = vadd.xlane.f32.xlu0 %v779
        %v781 = vpop.xlane.xlu0 %780
        %v782 = vsel %vm264, %v630, 0.0
        %783 = vadd.xlane.f32.xlu0 %v782
        %v784 = vpop.xlane.xlu0 %783
        %v785 = vsel %vm264, %v631, 0.0
        %786 = vadd.xlane.f32.xlu0 %v785
        %v787 = vpop.xlane.xlu0 %786
        %v788 = vsel %vm264, %v632, 0.0
        %789 = vadd.xlane.f32.xlu0 %v788
        %v790 = vpop.xlane.xlu0 %789
        %v791 = vsel %vm264, %v633, 0.0
        %792 = vadd.xlane.f32.xlu0 %v791
        %v793 = vpop.xlane.xlu0 %792
        %v794 = vsel %vm264, %v634, 0.0
        %795 = vadd.xlane.f32.xlu0 %v794
        %v796 = vpop.xlane.xlu0 %795
        %v797 = vsel %vm264, %v635, 0.0
        %798 = vadd.xlane.f32.xlu0 %v797
        %v799 = vpop.xlane.xlu0 %798
        %v800 = vsel %vm264, %v636, 0.0
        %801 = vadd.xlane.f32.xlu0 %v800
        %v802 = vpop.xlane.xlu0 %801
        %v803 = vsel %vm264, %v637, 0.0
        %804 = vadd.xlane.f32.xlu0 %v803
        %v805 = vpop.xlane.xlu0 %804
        %v806 = vsel %vm264, %v638, 0.0
        %807 = vadd.xlane.f32.xlu0 %v806
        %v808 = vpop.xlane.xlu0 %807
        %v809 = vsel %vm264, %v639, 0.0
        %810 = vadd.xlane.f32.xlu0 %v809
        %v811 = vpop.xlane.xlu0 %810
        %v812 = vsel %vm264, %v640, 0.0
        %813 = vadd.xlane.f32.xlu0 %v812
        %v814 = vpop.xlane.xlu0 %813
        %v815 = vsel %vm264, %v641, 0.0
        %816 = vadd.xlane.f32.xlu0 %v815
        %v817 = vpop.xlane.xlu0 %816
        %v818 = vsel %vm264, %v642, 0.0
        %819 = vadd.xlane.f32.xlu0 %v818
        %v820 = vpop.xlane.xlu0 %819
        %v821 = vsel %vm264, %v643, 0.0
        %822 = vadd.xlane.f32.xlu0 %v821
        %v823 = vpop.xlane.xlu0 %822
        %v824 = vsel %vm264, %v644, 0.0
        %825 = vadd.xlane.f32.xlu0 %v824
        %v826 = vpop.xlane.xlu0 %825
        %v827 = vsel %vm264, %v645, 0.0
        %828 = vadd.xlane.f32.xlu0 %v827
        %v829 = vpop.xlane.xlu0 %828
        %v830 = vsel %vm264, %v646, 0.0
        %831 = vadd.xlane.f32.xlu0 %v830
        %v832 = vpop.xlane.xlu0 %831
        %v833 = vsel %vm264, %v647, 0.0
        %834 = vadd.xlane.f32.xlu0 %v833
        %v835 = vpop.xlane.xlu0 %834
        %v836 = vsel %vm264, %v648, 0.0
        %837 = vadd.xlane.f32.xlu0 %v836
        %v838 = vpop.xlane.xlu0 %837
        %v839 = vsel %vm264, %v649, 0.0
        %840 = vadd.xlane.f32.xlu0 %v839
        %v841 = vpop.xlane.xlu0 %840
        %v842 = vmul.f32 %v652, %v457
        %v843 = vmul.f32 %v655, %v457
        %v844 = vmul.f32 %v658, %v457
        %v845 = vmul.f32 %v661, %v457
        %v846 = vmul.f32 %v664, %v457
        %v847 = vmul.f32 %v667, %v457
        %v848 = vmul.f32 %v670, %v457
        %v849 = vmul.f32 %v673, %v457
        %v850 = vmul.f32 %v676, %v457
        %v851 = vmul.f32 %v679, %v457
        %v852 = vmul.f32 %v682, %v457
        %v853 = vmul.f32 %v685, %v457
        %v854 = vmul.f32 %v688, %v457
        %v855 = vmul.f32 %v691, %v457
        %v856 = vmul.f32 %v694, %v457
        %v857 = vmul.f32 %v697, %v457
        %v858 = vmul.f32 %v700, %v457
        %v859 = vmul.f32 %v703, %v457
        %v860 = vmul.f32 %v706, %v457
        %v861 = vmul.f32 %v709, %v457
        %v862 = vmul.f32 %v712, %v457
        %v863 = vmul.f32 %v715, %v457
        %v864 = vmul.f32 %v718, %v457
        %v865 = vmul.f32 %v721, %v457
        %v866 = vmul.f32 %v724, %v457
        %v867 = vmul.f32 %v727, %v457
        %v868 = vmul.f32 %v730, %v457
        %v869 = vmul.f32 %v733, %v457
        %v870 = vmul.f32 %v736, %v457
        %v871 = vmul.f32 %v739, %v457
        %v872 = vmul.f32 %v742, %v457
        %v873 = vmul.f32 %v745, %v457
        %v874 = vmul.f32 %v748, %v457
        %v875 = vmul.f32 %v751, %v457
        %v876 = vmul.f32 %v754, %v457
        %v877 = vmul.f32 %v757, %v457
        %v878 = vmul.f32 %v760, %v457
        %v879 = vmul.f32 %v763, %v457
        %v880 = vmul.f32 %v766, %v457
        %v881 = vmul.f32 %v769, %v457
        %v882 = vmul.f32 %v772, %v457
        %v883 = vmul.f32 %v775, %v457
        %v884 = vmul.f32 %v778, %v457
        %v885 = vmul.f32 %v781, %v457
        %v886 = vmul.f32 %v784, %v457
        %v887 = vmul.f32 %v787, %v457
        %v888 = vmul.f32 %v790, %v457
        %v889 = vmul.f32 %v793, %v457
        %v890 = vmul.f32 %v796, %v457
        %v891 = vmul.f32 %v799, %v457
        %v892 = vmul.f32 %v802, %v457
        %v893 = vmul.f32 %v805, %v457
        %v894 = vmul.f32 %v808, %v457
        %v895 = vmul.f32 %v811, %v457
        %v896 = vmul.f32 %v814, %v457
        %v897 = vmul.f32 %v817, %v457
        %v898 = vmul.f32 %v820, %v457
        %v899 = vmul.f32 %v823, %v457
        %v900 = vmul.f32 %v826, %v457
        %v901 = vmul.f32 %v829, %v457
        %v902 = vmul.f32 %v832, %v457
        %v903 = vmul.f32 %v835, %v457
        %v904 = vmul.f32 %v838, %v457
        %v905 = vmul.f32 %v841, %v457
        %v906 = vadd.f32 %v842, 1e-05
        %v907 = vadd.f32 %v843, 1e-05
        %v908 = vadd.f32 %v844, 1e-05
        %v909 = vadd.f32 %v845, 1e-05
        %v910 = vadd.f32 %v846, 1e-05
        %v911 = vadd.f32 %v847, 1e-05
        %v912 = vadd.f32 %v848, 1e-05
        %v913 = vadd.f32 %v849, 1e-05
        %v914 = vadd.f32 %v850, 1e-05
        %v915 = vadd.f32 %v851, 1e-05
        %v916 = vadd.f32 %v852, 1e-05
        %v917 = vadd.f32 %v853, 1e-05
        %v918 = vadd.f32 %v854, 1e-05
        %v919 = vadd.f32 %v855, 1e-05
        %v920 = vadd.f32 %v856, 1e-05
        %v921 = vadd.f32 %v857, 1e-05
        %v922 = vadd.f32 %v858, 1e-05
        %v923 = vadd.f32 %v859, 1e-05
        %v924 = vadd.f32 %v860, 1e-05
        %v925 = vadd.f32 %v861, 1e-05
        %v926 = vadd.f32 %v862, 1e-05
        %v927 = vadd.f32 %v863, 1e-05
        %v928 = vadd.f32 %v864, 1e-05
        %v929 = vadd.f32 %v865, 1e-05
        %v930 = vadd.f32 %v866, 1e-05
        %v931 = vadd.f32 %v867, 1e-05
        %v932 = vadd.f32 %v868, 1e-05
        %v933 = vadd.f32 %v869, 1e-05
        %v934 = vadd.f32 %v870, 1e-05
        %v935 = vadd.f32 %v871, 1e-05
        %v936 = vadd.f32 %v872, 1e-05
        %v937 = vadd.f32 %v873, 1e-05
        %v938 = vadd.f32 %v874, 1e-05
        %v939 = vadd.f32 %v875, 1e-05
        %v940 = vadd.f32 %v876, 1e-05
        %v941 = vadd.f32 %v877, 1e-05
        %v942 = vadd.f32 %v878, 1e-05
        %v943 = vadd.f32 %v879, 1e-05
        %v944 = vadd.f32 %v880, 1e-05
        %v945 = vadd.f32 %v881, 1e-05
        %v946 = vadd.f32 %v882, 1e-05
        %v947 = vadd.f32 %v883, 1e-05
        %v948 = vadd.f32 %v884, 1e-05
        %v949 = vadd.f32 %v885, 1e-05
        %v950 = vadd.f32 %v886, 1e-05
        %v951 = vadd.f32 %v887, 1e-05
        %v952 = vadd.f32 %v888, 1e-05
        %v953 = vadd.f32 %v889, 1e-05
        %v954 = vadd.f32 %v890, 1e-05
        %v955 = vadd.f32 %v891, 1e-05
        %v956 = vadd.f32 %v892, 1e-05
        %v957 = vadd.f32 %v893, 1e-05
        %v958 = vadd.f32 %v894, 1e-05
        %v959 = vadd.f32 %v895, 1e-05
        %v960 = vadd.f32 %v896, 1e-05
        %v961 = vadd.f32 %v897, 1e-05
        %v962 = vadd.f32 %v898, 1e-05
        %v963 = vadd.f32 %v899, 1e-05
        %v964 = vadd.f32 %v900, 1e-05
        %v965 = vadd.f32 %v901, 1e-05
        %v966 = vadd.f32 %v902, 1e-05
        %v967 = vadd.f32 %v903, 1e-05
        %v968 = vadd.f32 %v904, 1e-05
        %v969 = vadd.f32 %v905, 1e-05
        %v970 = vrsqrt.pop %v906
        %v971 = vrsqrt.pop %v907
        %v972 = vrsqrt.pop %v908
        %v973 = vrsqrt.pop %v909
        %v974 = vrsqrt.pop %v910
        %v975 = vrsqrt.pop %v911
        %v976 = vrsqrt.pop %v912
        %v977 = vrsqrt.pop %v913
        %v978 = vrsqrt.pop %v914
        %v979 = vrsqrt.pop %v915
        %v980 = vrsqrt.pop %v916
        %v981 = vrsqrt.pop %v917
        %v982 = vrsqrt.pop %v918
        %v983 = vrsqrt.pop %v919
        %v984 = vrsqrt.pop %v920
        %v985 = vrsqrt.pop %v921
        %v986 = vrsqrt.pop %v922
        %v987 = vrsqrt.pop %v923
        %v988 = vrsqrt.pop %v924
        %v989 = vrsqrt.pop %v925
        %v990 = vrsqrt.pop %v926
        %v991 = vrsqrt.pop %v927
        %v992 = vrsqrt.pop %v928
        %v993 = vrsqrt.pop %v929
        %v994 = vrsqrt.pop %v930
        %v995 = vrsqrt.pop %v931
        %v996 = vrsqrt.pop %v932
        %v997 = vrsqrt.pop %v933
        %v998 = vrsqrt.pop %v934
        %v999 = vrsqrt.pop %v935
        %v1000 = vrsqrt.pop %v936
        %v1001 = vrsqrt.pop %v937
        %v1002 = vrsqrt.pop %v938
        %v1003 = vrsqrt.pop %v939
        %v1004 = vrsqrt.pop %v940
        %v1005 = vrsqrt.pop %v941
        %v1006 = vrsqrt.pop %v942
        %v1007 = vrsqrt.pop %v943
        %v1008 = vrsqrt.pop %v944
        %v1009 = vrsqrt.pop %v945
        %v1010 = vrsqrt.pop %v946
        %v1011 = vrsqrt.pop %v947
        %v1012 = vrsqrt.pop %v948
        %v1013 = vrsqrt.pop %v949
        %v1014 = vrsqrt.pop %v950
        %v1015 = vrsqrt.pop %v951
        %v1016 = vrsqrt.pop %v952
        %v1017 = vrsqrt.pop %v953
        %v1018 = vrsqrt.pop %v954
        %v1019 = vrsqrt.pop %v955
        %v1020 = vrsqrt.pop %v956
        %v1021 = vrsqrt.pop %v957
        %v1022 = vrsqrt.pop %v958
        %v1023 = vrsqrt.pop %v959
        %v1024 = vrsqrt.pop %v960
        %v1025 = vrsqrt.pop %v961
        %v1026 = vrsqrt.pop %v962
        %v1027 = vrsqrt.pop %v963
        %v1028 = vrsqrt.pop %v964
        %v1029 = vrsqrt.pop %v965
        %v1030 = vrsqrt.pop %v966
        %v1031 = vrsqrt.pop %v967
        %v1032 = vrsqrt.pop %v968
        %v1033 = vrsqrt.pop %v969
        %v1034 = vmul.f32 %v522, %v970
        %v1035 = vmul.f32 %v523, %v971
        %v1036 = vmul.f32 %v524, %v972
        %v1037 = vmul.f32 %v525, %v973
        %v1038 = vmul.f32 %v526, %v974
        %v1039 = vmul.f32 %v527, %v975
        %v1040 = vmul.f32 %v528, %v976
        %v1041 = vmul.f32 %v529, %v977
        %v1042 = vmul.f32 %v530, %v978
        %v1043 = vmul.f32 %v531, %v979
        %v1044 = vmul.f32 %v532, %v980
        %v1045 = vmul.f32 %v533, %v981
        %v1046 = vmul.f32 %v534, %v982
        %v1047 = vmul.f32 %v535, %v983
        %v1048 = vmul.f32 %v536, %v984
        %v1049 = vmul.f32 %v537, %v985
        %v1050 = vmul.f32 %v538, %v986
        %v1051 = vmul.f32 %v539, %v987
        %v1052 = vmul.f32 %v540, %v988
        %v1053 = vmul.f32 %v541, %v989
        %v1054 = vmul.f32 %v542, %v990
        %v1055 = vmul.f32 %v543, %v991
        %v1056 = vmul.f32 %v544, %v992
        %v1057 = vmul.f32 %v545, %v993
        %v1058 = vmul.f32 %v546, %v994
        %v1059 = vmul.f32 %v547, %v995
        %v1060 = vmul.f32 %v548, %v996
        %v1061 = vmul.f32 %v549, %v997
        %v1062 = vmul.f32 %v550, %v998
        %v1063 = vmul.f32 %v551, %v999
        %v1064 = vmul.f32 %v552, %v1000
        %v1065 = vmul.f32 %v553, %v1001
        %v1066 = vmul.f32 %v554, %v1002
        %v1067 = vmul.f32 %v555, %v1003
        %v1068 = vmul.f32 %v556, %v1004
        %v1069 = vmul.f32 %v557, %v1005
        %v1070 = vmul.f32 %v558, %v1006
        %v1071 = vmul.f32 %v559, %v1007
        %v1072 = vmul.f32 %v560, %v1008
        %v1073 = vmul.f32 %v561, %v1009
        %v1074 = vmul.f32 %v562, %v1010
        %v1075 = vmul.f32 %v563, %v1011
        %v1076 = vmul.f32 %v564, %v1012
        %v1077 = vmul.f32 %v565, %v1013
        %v1078 = vmul.f32 %v566, %v1014
        %v1079 = vmul.f32 %v567, %v1015
        %v1080 = vmul.f32 %v568, %v1016
        %v1081 = vmul.f32 %v569, %v1017
        %v1082 = vmul.f32 %v570, %v1018
        %v1083 = vmul.f32 %v571, %v1019
        %v1084 = vmul.f32 %v572, %v1020
        %v1085 = vmul.f32 %v573, %v1021
        %v1086 = vmul.f32 %v574, %v1022
        %v1087 = vmul.f32 %v575, %v1023
        %v1088 = vmul.f32 %v576, %v1024
        %v1089 = vmul.f32 %v577, %v1025
        %v1090 = vmul.f32 %v578, %v1026
        %v1091 = vmul.f32 %v579, %v1027
        %v1092 = vmul.f32 %v580, %v1028
        %v1093 = vmul.f32 %v581, %v1029
        %v1094 = vmul.f32 %v582, %v1030
        %v1095 = vmul.f32 %v583, %v1031
        %v1096 = vmul.f32 %v584, %v1032
        %v1097 = vmul.f32 %v585, %v1033
        %v1098 = vld [vmem:[%s1] sm:$0x1]
        %v1100 = vlaneseq
        %v1101 = vshrl.u32 %v1100, 7
        %v1102 = vsub.s32 0, %v1101
        %v1103 = vrot.slane %v1098, %v1102
        %v1105 = vmul.f32 %v1034, %v1103
        %v1106 = vmul.f32 %v1035, %v1103
        %v1107 = vmul.f32 %v1036, %v1103
        %v1108 = vmul.f32 %v1037, %v1103
        %v1109 = vmul.f32 %v1038, %v1103
        %v1110 = vmul.f32 %v1039, %v1103
        %v1111 = vmul.f32 %v1040, %v1103
        %v1112 = vmul.f32 %v1041, %v1103
        %v1113 = vmul.f32 %v1042, %v1103
        %v1114 = vmul.f32 %v1043, %v1103
        %v1115 = vmul.f32 %v1044, %v1103
        %v1116 = vmul.f32 %v1045, %v1103
        %v1117 = vmul.f32 %v1046, %v1103
        %v1118 = vmul.f32 %v1047, %v1103
        %v1119 = vmul.f32 %v1048, %v1103
        %v1120 = vmul.f32 %v1049, %v1103
        %v1121 = vmul.f32 %v1050, %v1103
        %v1122 = vmul.f32 %v1051, %v1103
        %v1123 = vmul.f32 %v1052, %v1103
        %v1124 = vmul.f32 %v1053, %v1103
        %v1125 = vmul.f32 %v1054, %v1103
        %v1126 = vmul.f32 %v1055, %v1103
        %v1127 = vmul.f32 %v1056, %v1103
        %v1128 = vmul.f32 %v1057, %v1103
        %v1129 = vmul.f32 %v1058, %v1103
        %v1130 = vmul.f32 %v1059, %v1103
        %v1131 = vmul.f32 %v1060, %v1103
        %v1132 = vmul.f32 %v1061, %v1103
        %v1133 = vmul.f32 %v1062, %v1103
        %v1134 = vmul.f32 %v1063, %v1103
        %v1135 = vmul.f32 %v1064, %v1103
        %v1136 = vmul.f32 %v1065, %v1103
        %v1137 = vmul.f32 %v1066, %v1103
        %v1138 = vmul.f32 %v1067, %v1103
        %v1139 = vmul.f32 %v1068, %v1103
        %v1140 = vmul.f32 %v1069, %v1103
        %v1141 = vmul.f32 %v1070, %v1103
        %v1142 = vmul.f32 %v1071, %v1103
        %v1143 = vmul.f32 %v1072, %v1103
        %v1144 = vmul.f32 %v1073, %v1103
        %v1145 = vmul.f32 %v1074, %v1103
        %v1146 = vmul.f32 %v1075, %v1103
        %v1147 = vmul.f32 %v1076, %v1103
        %v1148 = vmul.f32 %v1077, %v1103
        %v1149 = vmul.f32 %v1078, %v1103
        %v1150 = vmul.f32 %v1079, %v1103
        %v1151 = vmul.f32 %v1080, %v1103
        %v1152 = vmul.f32 %v1081, %v1103
        %v1153 = vmul.f32 %v1082, %v1103
        %v1154 = vmul.f32 %v1083, %v1103
        %v1155 = vmul.f32 %v1084, %v1103
        %v1156 = vmul.f32 %v1085, %v1103
        %v1157 = vmul.f32 %v1086, %v1103
        %v1158 = vmul.f32 %v1087, %v1103
        %v1159 = vmul.f32 %v1088, %v1103
        %v1160 = vmul.f32 %v1089, %v1103
        %v1161 = vmul.f32 %v1090, %v1103
        %v1162 = vmul.f32 %v1091, %v1103
        %v1163 = vmul.f32 %v1092, %v1103
        %v1164 = vmul.f32 %v1093, %v1103
        %v1165 = vmul.f32 %v1094, %v1103
        %v1166 = vmul.f32 %v1095, %v1103
        %v1167 = vmul.f32 %v1096, %v1103
        %v1168 = vmul.f32 %v1097, %v1103
        %v1169 = vld [vmem:[%s2] sm:$0x1]
        %v1171 = vlaneseq
        %v1172 = vshrl.u32 %v1171, 7
        %v1173 = vsub.s32 0, %v1172
        %v1174 = vrot.slane %v1169, %v1173
        %v1176 = vadd.f32 %v1105, %v1174
        %v1177 = vadd.f32 %v1106, %v1174
        %v1178 = vadd.f32 %v1107, %v1174
        %v1179 = vadd.f32 %v1108, %v1174
        %v1180 = vadd.f32 %v1109, %v1174
        %v1181 = vadd.f32 %v1110, %v1174
        %v1182 = vadd.f32 %v1111, %v1174
        %v1183 = vadd.f32 %v1112, %v1174
        %v1184 = vadd.f32 %v1113, %v1174
        %v1185 = vadd.f32 %v1114, %v1174
        %v1186 = vadd.f32 %v1115, %v1174
        %v1187 = vadd.f32 %v1116, %v1174
        %v1188 = vadd.f32 %v1117, %v1174
        %v1189 = vadd.f32 %v1118, %v1174
        %v1190 = vadd.f32 %v1119, %v1174
        %v1191 = vadd.f32 %v1120, %v1174
        %v1192 = vadd.f32 %v1121, %v1174
        %v1193 = vadd.f32 %v1122, %v1174
        %v1194 = vadd.f32 %v1123, %v1174
        %v1195 = vadd.f32 %v1124, %v1174
        %v1196 = vadd.f32 %v1125, %v1174
        %v1197 = vadd.f32 %v1126, %v1174
        %v1198 = vadd.f32 %v1127, %v1174
        %v1199 = vadd.f32 %v1128, %v1174
        %v1200 = vadd.f32 %v1129, %v1174
        %v1201 = vadd.f32 %v1130, %v1174
        %v1202 = vadd.f32 %v1131, %v1174
        %v1203 = vadd.f32 %v1132, %v1174
        %v1204 = vadd.f32 %v1133, %v1174
        %v1205 = vadd.f32 %v1134, %v1174
        %v1206 = vadd.f32 %v1135, %v1174
        %v1207 = vadd.f32 %v1136, %v1174
        %v1208 = vadd.f32 %v1137, %v1174
        %v1209 = vadd.f32 %v1138, %v1174
        %v1210 = vadd.f32 %v1139, %v1174
        %v1211 = vadd.f32 %v1140, %v1174
        %v1212 = vadd.f32 %v1141, %v1174
        %v1213 = vadd.f32 %v1142, %v1174
        %v1214 = vadd.f32 %v1143, %v1174
        %v1215 = vadd.f32 %v1144, %v1174
        %v1216 = vadd.f32 %v1145, %v1174
        %v1217 = vadd.f32 %v1146, %v1174
        %v1218 = vadd.f32 %v1147, %v1174
        %v1219 = vadd.f32 %v1148, %v1174
        %v1220 = vadd.f32 %v1149, %v1174
        %v1221 = vadd.f32 %v1150, %v1174
        %v1222 = vadd.f32 %v1151, %v1174
        %v1223 = vadd.f32 %v1152, %v1174
        %v1224 = vadd.f32 %v1153, %v1174
        %v1225 = vadd.f32 %v1154, %v1174
        %v1226 = vadd.f32 %v1155, %v1174
        %v1227 = vadd.f32 %v1156, %v1174
        %v1228 = vadd.f32 %v1157, %v1174
        %v1229 = vadd.f32 %v1158, %v1174
        %v1230 = vadd.f32 %v1159, %v1174
        %v1231 = vadd.f32 %v1160, %v1174
        %v1232 = vadd.f32 %v1161, %v1174
        %v1233 = vadd.f32 %v1162, %v1174
        %v1234 = vadd.f32 %v1163, %v1174
        %v1235 = vadd.f32 %v1164, %v1174
        %v1236 = vadd.f32 %v1165, %v1174
        %v1237 = vadd.f32 %v1166, %v1174
        %v1238 = vadd.f32 %v1167, %v1174
        %v1239 = vadd.f32 %v1168, %v1174
        %v1240 = vpack.c.bf16 %v1177, %v1176
        %v1241 = vpack.c.bf16 %v1179, %v1178
        %v1242 = vpack.c.bf16 %v1181, %v1180
        %v1243 = vpack.c.bf16 %v1183, %v1182
        %v1244 = vpack.c.bf16 %v1185, %v1184
        %v1245 = vpack.c.bf16 %v1187, %v1186
        %v1246 = vpack.c.bf16 %v1189, %v1188
        %v1247 = vpack.c.bf16 %v1191, %v1190
        %v1248 = vpack.c.bf16 %v1193, %v1192
        %v1249 = vpack.c.bf16 %v1195, %v1194
        %v1250 = vpack.c.bf16 %v1197, %v1196
        %v1251 = vpack.c.bf16 %v1199, %v1198
        %v1252 = vpack.c.bf16 %v1201, %v1200
        %v1253 = vpack.c.bf16 %v1203, %v1202
        %v1254 = vpack.c.bf16 %v1205, %v1204
        %v1255 = vpack.c.bf16 %v1207, %v1206
        %v1256 = vpack.c.bf16 %v1209, %v1208
        %v1257 = vpack.c.bf16 %v1211, %v1210
        %v1258 = vpack.c.bf16 %v1213, %v1212
        %v1259 = vpack.c.bf16 %v1215, %v1214
        %v1260 = vpack.c.bf16 %v1217, %v1216
        %v1261 = vpack.c.bf16 %v1219, %v1218
        %v1262 = vpack.c.bf16 %v1221, %v1220
        %v1263 = vpack.c.bf16 %v1223, %v1222
        %v1264 = vpack.c.bf16 %v1225, %v1224
        %v1265 = vpack.c.bf16 %v1227, %v1226
        %v1266 = vpack.c.bf16 %v1229, %v1228
        %v1267 = vpack.c.bf16 %v1231, %v1230
        %v1268 = vpack.c.bf16 %v1233, %v1232
        %v1269 = vpack.c.bf16 %v1235, %v1234
        %v1270 = vpack.c.bf16 %v1237, %v1236
        %v1271 = vpack.c.bf16 %v1239, %v1238
        %v1272 = vld [vmem:[%s3] sm:$0xff]
        %v1273 = vld [vmem:[%s3 + $0x8] sm:$0xff]
        %v1274 = vld [vmem:[%s3 + $0x10] sm:$0xff]
        %v1275 = vld [vmem:[%s3 + $0x18] sm:$0xff]
        %v1276 = vld [vmem:[%s3 + $0x20] sm:$0xff]
        %v1277 = vld [vmem:[%s3 + $0x28] sm:$0xff]
        %v1278 = vld [vmem:[%s3 + $0x30] sm:$0xff]
        %v1279 = vld [vmem:[%s3 + $0x38] sm:$0xff]
        %v1288 = vunpack.c.l.b16 %v1272
        %v1289 = vunpack.c.h.b16 %v1272
        %v1290 = vunpack.c.l.b16 %v1273
        %v1291 = vunpack.c.h.b16 %v1273
        %v1292 = vunpack.c.l.b16 %v1274
        %v1293 = vunpack.c.h.b16 %v1274
        %v1294 = vunpack.c.l.b16 %v1275
        %v1295 = vunpack.c.h.b16 %v1275
        %v1296 = vunpack.c.l.b16 %v1276
        %v1297 = vunpack.c.h.b16 %v1276
        %v1298 = vunpack.c.l.b16 %v1277
        %v1299 = vunpack.c.h.b16 %v1277
        %v1300 = vunpack.c.l.b16 %v1278
        %v1301 = vunpack.c.h.b16 %v1278
        %v1302 = vunpack.c.l.b16 %v1279
        %v1303 = vunpack.c.h.b16 %v1279
        %v1304 = vpack.c.b16 %v1290, %v1288
        %v1305 = vpack.c.b16 %v1291, %v1289
        %v1306 = vpack.c.b16 %v1294, %v1292
        %v1307 = vpack.c.b16 %v1295, %v1293
        %v1308 = vpack.c.b16 %v1298, %v1296
        %v1309 = vpack.c.b16 %v1299, %v1297
        %v1310 = vpack.c.b16 %v1302, %v1300
        %v1311 = vpack.c.b16 %v1303, %v1301
        %v1321 = vsel %vm264, %v1240, 0
        %v1324 = vsel %vm264, %v1241, 0
        %v1327 = vsel %vm264, %v1242, 0
        %v1330 = vsel %vm264, %v1243, 0
        %v1333 = vsel %vm264, %v1244, 0
        %v1336 = vsel %vm264, %v1245, 0
        %v1339 = vsel %vm264, %v1246, 0
        %v1342 = vsel %vm264, %v1247, 0
        %v1345 = vsel %vm264, %v1248, 0
        %v1348 = vsel %vm264, %v1249, 0
        %v1351 = vsel %vm264, %v1250, 0
        %v1354 = vsel %vm264, %v1251, 0
        %v1357 = vsel %vm264, %v1252, 0
        %v1360 = vsel %vm264, %v1253, 0
        %v1363 = vsel %vm264, %v1254, 0
        %v1366 = vsel %vm264, %v1255, 0
        %v1369 = vsel %vm264, %v1256, 0
        %v1372 = vsel %vm264, %v1257, 0
        %v1375 = vsel %vm264, %v1258, 0
        %v1378 = vsel %vm264, %v1259, 0
        %v1381 = vsel %vm264, %v1260, 0
        %v1384 = vsel %vm264, %v1261, 0
        %v1387 = vsel %vm264, %v1262, 0
        %v1390 = vsel %vm264, %v1263, 0
        %v1393 = vsel %vm264, %v1264, 0
        %v1396 = vsel %vm264, %v1265, 0
        %v1399 = vsel %vm264, %v1266, 0
        %v1402 = vsel %vm264, %v1267, 0
        %v1405 = vsel %vm264, %v1268, 0
        %v1408 = vsel %vm264, %v1269, 0
        %v1411 = vsel %vm264, %v1270, 0
        %v1414 = vsel %vm264, %v1271, 0
        %1416 = vmatprep.subr.bf16.mxu0 %v1305
        %1417 = vmatpush1.bf16.msra.mxu0 %v1304
        %1418 = vmatprep.subr.bf16.mxu0 %v1307
        %1419 = vmatpush1.bf16.msra.mxu0 %v1306
        %1420 = vmatprep.subr.bf16.mxu0 %v1309
        %1421 = vmatpush1.bf16.msra.mxu0 %v1308
        %1422 = vmatprep.subr.bf16.mxu0 %v1311
        %1423 = vmatpush1.bf16.msra.mxu0 %v1310
        %1424 = vmatprep.subr.bf16.mxu0 0
        %1425 = vmatpush1.bf16.msra.mxu0 0
        %1426 = vmatprep.subr.bf16.mxu0 0
        %1427 = vmatpush1.bf16.msra.mxu0 0
        %1428 = vmatprep.subr.bf16.mxu0 0
        %1429 = vmatpush1.bf16.msra.mxu0 0
        %1430 = vmatprep.subr.bf16.mxu0 0
        %1431 = vmatpush1.bf16.msra.mxu0 0
        %1432 = vmatprep.subr.bf16.mxu0 0
        %1433 = vmatpush1.bf16.msra.mxu0 0
        %1434 = vmatprep.subr.bf16.mxu0 0
        %1435 = vmatpush1.bf16.msra.mxu0 0
        %1436 = vmatprep.subr.bf16.mxu0 0
        %1437 = vmatpush1.bf16.msra.mxu0 0
        %1438 = vmatprep.subr.bf16.mxu0 0
        %1439 = vmatpush1.bf16.msra.mxu0 0
        %1440 = vmatprep.subr.bf16.mxu0 0
        %1441 = vmatpush1.bf16.msra.mxu0 0
        %1442 = vmatprep.subr.bf16.mxu0 0
        %1443 = vmatpush1.bf16.msra.mxu0 0
        %1444 = vmatprep.subr.bf16.mxu0 0
        %1445 = vmatpush1.bf16.msra.mxu0 0
        %1446 = vmatprep.subr.bf16.mxu0 0
        %1447 = vmatpush1.bf16.msra.mxu0 0
        %1448 = vmatprep.mubr.bf16.mxu0 0
        %1449 = vmatmul.mubr.bf16.gmra.mrb[0].mxu0 %v1321
        %v1450 = vpop.f32.mrb[0].mxu0
        %v1451 = vadd.f32 0.0, %v1450
        %v1452 = vpop.f32.mrb[0].mxu0
        %v1453 = vadd.f32 0.0, %v1452
        %v1454 = vpop.f32.mrb[0].mxu0
        %v1455 = vadd.f32 0.0, %v1454
        %v1456 = vpop.f32.mrb[0].mxu0
        %v1457 = vadd.f32 0.0, %v1456
        %1458 = vmatprep.mubr.bf16.mxu0 0
        %1459 = vmatmul.mubr.bf16.gmra.mrb[0].mxu0 %v1324
        %v1460 = vpop.f32.mrb[0].mxu0
        %v1461 = vadd.f32 0.0, %v1460
        %v1462 = vpop.f32.mrb[0].mxu0
        %v1463 = vadd.f32 0.0, %v1462
        %v1464 = vpop.f32.mrb[0].mxu0
        %v1465 = vadd.f32 0.0, %v1464
        %v1466 = vpop.f32.mrb[0].mxu0
        %v1467 = vadd.f32 0.0, %v1466
        %1468 = vmatprep.mubr.bf16.mxu0 0
        %1469 = vmatmul.mubr.bf16.gmra.mrb[0].mxu0 %v1327
        %v1470 = vpop.f32.mrb[0].mxu0
        %v1471 = vadd.f32 0.0, %v1470
        %v1472 = vpop.f32.mrb[0].mxu0
        %v1473 = vadd.f32 0.0, %v1472
        %v1474 = vpop.f32.mrb[0].mxu0
        %v1475 = vadd.f32 0.0, %v1474
        %v1476 = vpop.f32.mrb[0].mxu0
        %v1477 = vadd.f32 0.0, %v1476
        %1478 = vmatprep.mubr.bf16.mxu0 0
        %1479 = vmatmul.mubr.bf16.gmra.mrb[0].mxu0 %v1330
        %v1480 = vpop.f32.mrb[0].mxu0
        %v1481 = vadd.f32 0.0, %v1480
        %v1482 = vpop.f32.mrb[0].mxu0
        %v1483 = vadd.f32 0.0, %v1482
        %v1484 = vpop.f32.mrb[0].mxu0
        %v1485 = vadd.f32 0.0, %v1484
        %v1486 = vpop.f32.mrb[0].mxu0
        %v1487 = vadd.f32 0.0, %v1486
        %1488 = vmatprep.mubr.bf16.mxu0 0
        %1489 = vmatmul.mubr.bf16.gmra.mrb[0].mxu0 %v1333
        %v1490 = vpop.f32.mrb[0].mxu0
        %v1491 = vadd.f32 0.0, %v1490
        %v1492 = vpop.f32.mrb[0].mxu0
        %v1493 = vadd.f32 0.0, %v1492
        %v1494 = vpop.f32.mrb[0].mxu0
        %v1495 = vadd.f32 0.0, %v1494
        %v1496 = vpop.f32.mrb[0].mxu0
        %v1497 = vadd.f32 0.0, %v1496
        %1498 = vmatprep.mubr.bf16.mxu0 0
        %1499 = vmatmul.mubr.bf16.gmra.mrb[0].mxu0 %v1336
        %v1500 = vpop.f32.mrb[0].mxu0
        %v1501 = vadd.f32 0.0, %v1500
        %v1502 = vpop.f32.mrb[0].mxu0
        %v1503 = vadd.f32 0.0, %v1502
        %v1504 = vpop.f32.mrb[0].mxu0
        %v1505 = vadd.f32 0.0, %v1504
        %v1506 = vpop.f32.mrb[0].mxu0
        %v1507 = vadd.f32 0.0, %v1506
        %1508 = vmatprep.mubr.bf16.mxu0 0
        %1509 = vmatmul.mubr.bf16.gmra.mrb[0].mxu0 %v1339
        %v1510 = vpop.f32.mrb[0].mxu0
        %v1511 = vadd.f32 0.0, %v1510
        %v1512 = vpop.f32.mrb[0].mxu0
        %v1513 = vadd.f32 0.0, %v1512
        %v1514 = vpop.f32.mrb[0].mxu0
        %v1515 = vadd.f32 0.0, %v1514
        %v1516 = vpop.f32.mrb[0].mxu0
        %v1517 = vadd.f32 0.0, %v1516
        %1518 = vmatprep.mubr.bf16.mxu0 0
        %1519 = vmatmul.mubr.bf16.gmra.mrb[0].mxu0 %v1342
        %v1520 = vpop.f32.mrb[0].mxu0
        %v1521 = vadd.f32 0.0, %v1520
        %v1522 = vpop.f32.mrb[0].mxu0
        %v1523 = vadd.f32 0.0, %v1522
        %v1524 = vpop.f32.mrb[0].mxu0
        %v1525 = vadd.f32 0.0, %v1524
        %v1526 = vpop.f32.mrb[0].mxu0
        %v1527 = vadd.f32 0.0, %v1526
        %1528 = vmatprep.mubr.bf16.mxu0 0
        %1529 = vmatmul.mubr.bf16.gmra.mrb[0].mxu0 %v1345
        %v1530 = vpop.f32.mrb[0].mxu0
        %v1531 = vadd.f32 0.0, %v1530
        %v1532 = vpop.f32.mrb[0].mxu0
        %v1533 = vadd.f32 0.0, %v1532
        %v1534 = vpop.f32.mrb[0].mxu0
        %v1535 = vadd.f32 0.0, %v1534
        %v1536 = vpop.f32.mrb[0].mxu0
        %v1537 = vadd.f32 0.0, %v1536
        %1538 = vmatprep.mubr.bf16.mxu0 0
        %1539 = vmatmul.mubr.bf16.gmra.mrb[0].mxu0 %v1348
        %v1540 = vpop.f32.mrb[0].mxu0
        %v1541 = vadd.f32 0.0, %v1540
        %v1542 = vpop.f32.mrb[0].mxu0
        %v1543 = vadd.f32 0.0, %v1542
        %v1544 = vpop.f32.mrb[0].mxu0
        %v1545 = vadd.f32 0.0, %v1544
        %v1546 = vpop.f32.mrb[0].mxu0
        %v1547 = vadd.f32 0.0, %v1546
        %1548 = vmatprep.mubr.bf16.mxu0 0
        %1549 = vmatmul.mubr.bf16.gmra.mrb[0].mxu0 %v1351
        %v1550 = vpop.f32.mrb[0].mxu0
        %v1551 = vadd.f32 0.0, %v1550
        %v1552 = vpop.f32.mrb[0].mxu0
        %v1553 = vadd.f32 0.0, %v1552
        %v1554 = vpop.f32.mrb[0].mxu0
        %v1555 = vadd.f32 0.0, %v1554
        %v1556 = vpop.f32.mrb[0].mxu0
        %v1557 = vadd.f32 0.0, %v1556
        %1558 = vmatprep.mubr.bf16.mxu0 0
        %1559 = vmatmul.mubr.bf16.gmra.mrb[0].mxu0 %v1354
        %v1560 = vpop.f32.mrb[0].mxu0
        %v1561 = vadd.f32 0.0, %v1560
        %v1562 = vpop.f32.mrb[0].mxu0
        %v1563 = vadd.f32 0.0, %v1562
        %v1564 = vpop.f32.mrb[0].mxu0
        %v1565 = vadd.f32 0.0, %v1564
        %v1566 = vpop.f32.mrb[0].mxu0
        %v1567 = vadd.f32 0.0, %v1566
        %1568 = vmatprep.mubr.bf16.mxu0 0
        %1569 = vmatmul.mubr.bf16.gmra.mrb[0].mxu0 %v1357
        %v1570 = vpop.f32.mrb[0].mxu0
        %v1571 = vadd.f32 0.0, %v1570
        %v1572 = vpop.f32.mrb[0].mxu0
        %v1573 = vadd.f32 0.0, %v1572
        %v1574 = vpop.f32.mrb[0].mxu0
        %v1575 = vadd.f32 0.0, %v1574
        %v1576 = vpop.f32.mrb[0].mxu0
        %v1577 = vadd.f32 0.0, %v1576
        %1578 = vmatprep.mubr.bf16.mxu0 0
        %1579 = vmatmul.mubr.bf16.gmra.mrb[0].mxu0 %v1360
        %v1580 = vpop.f32.mrb[0].mxu0
        %v1581 = vadd.f32 0.0, %v1580
        %v1582 = vpop.f32.mrb[0].mxu0
        %v1583 = vadd.f32 0.0, %v1582
        %v1584 = vpop.f32.mrb[0].mxu0
        %v1585 = vadd.f32 0.0, %v1584
        %v1586 = vpop.f32.mrb[0].mxu0
        %v1587 = vadd.f32 0.0, %v1586
        %1588 = vmatprep.mubr.bf16.mxu0 0
        %1589 = vmatmul.mubr.bf16.gmra.mrb[0].mxu0 %v1363
        %v1590 = vpop.f32.mrb[0].mxu0
        %v1591 = vadd.f32 0.0, %v1590
        %v1592 = vpop.f32.mrb[0].mxu0
        %v1593 = vadd.f32 0.0, %v1592
        %v1594 = vpop.f32.mrb[0].mxu0
        %v1595 = vadd.f32 0.0, %v1594
        %v1596 = vpop.f32.mrb[0].mxu0
        %v1597 = vadd.f32 0.0, %v1596
        %1598 = vmatprep.mubr.bf16.mxu0 0
        %1599 = vmatmul.mubr.bf16.gmra.mrb[0].mxu0 %v1366
        %v1600 = vpop.f32.mrb[0].mxu0
        %v1601 = vadd.f32 0.0, %v1600
        %v1602 = vpop.f32.mrb[0].mxu0
        %v1603 = vadd.f32 0.0, %v1602
        %v1604 = vpop.f32.mrb[0].mxu0
        %v1605 = vadd.f32 0.0, %v1604
        %v1606 = vpop.f32.mrb[0].mxu0
        %v1607 = vadd.f32 0.0, %v1606
        %1608 = vmatprep.mubr.bf16.mxu0 0
        %1609 = vmatmul.mubr.bf16.gmra.mrb[0].mxu0 %v1369
        %v1610 = vpop.f32.mrb[0].mxu0
        %v1611 = vadd.f32 0.0, %v1610
        %v1612 = vpop.f32.mrb[0].mxu0
        %v1613 = vadd.f32 0.0, %v1612
        %v1614 = vpop.f32.mrb[0].mxu0
        %v1615 = vadd.f32 0.0, %v1614
        %v1616 = vpop.f32.mrb[0].mxu0
        %v1617 = vadd.f32 0.0, %v1616
        %1618 = vmatprep.mubr.bf16.mxu0 0
        %1619 = vmatmul.mubr.bf16.gmra.mrb[0].mxu0 %v1372
        %v1620 = vpop.f32.mrb[0].mxu0
        %v1621 = vadd.f32 0.0, %v1620
        %v1622 = vpop.f32.mrb[0].mxu0
        %v1623 = vadd.f32 0.0, %v1622
        %v1624 = vpop.f32.mrb[0].mxu0
        %v1625 = vadd.f32 0.0, %v1624
        %v1626 = vpop.f32.mrb[0].mxu0
        %v1627 = vadd.f32 0.0, %v1626
        %1628 = vmatprep.mubr.bf16.mxu0 0
        %1629 = vmatmul.mubr.bf16.gmra.mrb[0].mxu0 %v1375
        %v1630 = vpop.f32.mrb[0].mxu0
        %v1631 = vadd.f32 0.0, %v1630
        %v1632 = vpop.f32.mrb[0].mxu0
        %v1633 = vadd.f32 0.0, %v1632
        %v1634 = vpop.f32.mrb[0].mxu0
        %v1635 = vadd.f32 0.0, %v1634
        %v1636 = vpop.f32.mrb[0].mxu0
        %v1637 = vadd.f32 0.0, %v1636
        %1638 = vmatprep.mubr.bf16.mxu0 0
        %1639 = vmatmul.mubr.bf16.gmra.mrb[0].mxu0 %v1378
        %v1640 = vpop.f32.mrb[0].mxu0
        %v1641 = vadd.f32 0.0, %v1640
        %v1642 = vpop.f32.mrb[0].mxu0
        %v1643 = vadd.f32 0.0, %v1642
        %v1644 = vpop.f32.mrb[0].mxu0
        %v1645 = vadd.f32 0.0, %v1644
        %v1646 = vpop.f32.mrb[0].mxu0
        %v1647 = vadd.f32 0.0, %v1646
        %1648 = vmatprep.mubr.bf16.mxu0 0
        %1649 = vmatmul.mubr.bf16.gmra.mrb[0].mxu0 %v1381
        %v1650 = vpop.f32.mrb[0].mxu0
        %v1651 = vadd.f32 0.0, %v1650
        %v1652 = vpop.f32.mrb[0].mxu0
        %v1653 = vadd.f32 0.0, %v1652
        %v1654 = vpop.f32.mrb[0].mxu0
        %v1655 = vadd.f32 0.0, %v1654
        %v1656 = vpop.f32.mrb[0].mxu0
        %v1657 = vadd.f32 0.0, %v1656
        %1658 = vmatprep.mubr.bf16.mxu0 0
        %1659 = vmatmul.mubr.bf16.gmra.mrb[0].mxu0 %v1384
        %v1660 = vpop.f32.mrb[0].mxu0
        %v1661 = vadd.f32 0.0, %v1660
        %v1662 = vpop.f32.mrb[0].mxu0
        %v1663 = vadd.f32 0.0, %v1662
        %v1664 = vpop.f32.mrb[0].mxu0
        %v1665 = vadd.f32 0.0, %v1664
        %v1666 = vpop.f32.mrb[0].mxu0
        %v1667 = vadd.f32 0.0, %v1666
        %1668 = vmatprep.mubr.bf16.mxu0 0
        %1669 = vmatmul.mubr.bf16.gmra.mrb[0].mxu0 %v1387
        %v1670 = vpop.f32.mrb[0].mxu0
        %v1671 = vadd.f32 0.0, %v1670
        %v1672 = vpop.f32.mrb[0].mxu0
        %v1673 = vadd.f32 0.0, %v1672
        %v1674 = vpop.f32.mrb[0].mxu0
        %v1675 = vadd.f32 0.0, %v1674
        %v1676 = vpop.f32.mrb[0].mxu0
        %v1677 = vadd.f32 0.0, %v1676
        %1678 = vmatprep.mubr.bf16.mxu0 0
        %1679 = vmatmul.mubr.bf16.gmra.mrb[0].mxu0 %v1390
        %v1680 = vpop.f32.mrb[0].mxu0
        %v1681 = vadd.f32 0.0, %v1680
        %v1682 = vpop.f32.mrb[0].mxu0
        %v1683 = vadd.f32 0.0, %v1682
        %v1684 = vpop.f32.mrb[0].mxu0
        %v1685 = vadd.f32 0.0, %v1684
        %v1686 = vpop.f32.mrb[0].mxu0
        %v1687 = vadd.f32 0.0, %v1686
        %1688 = vmatprep.mubr.bf16.mxu0 0
        %1689 = vmatmul.mubr.bf16.gmra.mrb[0].mxu0 %v1393
        %v1690 = vpop.f32.mrb[0].mxu0
        %v1691 = vadd.f32 0.0, %v1690
        %v1692 = vpop.f32.mrb[0].mxu0
        %v1693 = vadd.f32 0.0, %v1692
        %v1694 = vpop.f32.mrb[0].mxu0
        %v1695 = vadd.f32 0.0, %v1694
        %v1696 = vpop.f32.mrb[0].mxu0
        %v1697 = vadd.f32 0.0, %v1696
        %1698 = vmatprep.mubr.bf16.mxu0 0
        %1699 = vmatmul.mubr.bf16.gmra.mrb[0].mxu0 %v1396
        %v1700 = vpop.f32.mrb[0].mxu0
        %v1701 = vadd.f32 0.0, %v1700
        %v1702 = vpop.f32.mrb[0].mxu0
        %v1703 = vadd.f32 0.0, %v1702
        %v1704 = vpop.f32.mrb[0].mxu0
        %v1705 = vadd.f32 0.0, %v1704
        %v1706 = vpop.f32.mrb[0].mxu0
        %v1707 = vadd.f32 0.0, %v1706
        %1708 = vmatprep.mubr.bf16.mxu0 0
        %1709 = vmatmul.mubr.bf16.gmra.mrb[0].mxu0 %v1399
        %v1710 = vpop.f32.mrb[0].mxu0
        %v1711 = vadd.f32 0.0, %v1710
        %v1712 = vpop.f32.mrb[0].mxu0
        %v1713 = vadd.f32 0.0, %v1712
        %v1714 = vpop.f32.mrb[0].mxu0
        %v1715 = vadd.f32 0.0, %v1714
        %v1716 = vpop.f32.mrb[0].mxu0
        %v1717 = vadd.f32 0.0, %v1716
        %1718 = vmatprep.mubr.bf16.mxu0 0
        %1719 = vmatmul.mubr.bf16.gmra.mrb[0].mxu0 %v1402
        %v1720 = vpop.f32.mrb[0].mxu0
        %v1721 = vadd.f32 0.0, %v1720
        %v1722 = vpop.f32.mrb[0].mxu0
        %v1723 = vadd.f32 0.0, %v1722
        %v1724 = vpop.f32.mrb[0].mxu0
        %v1725 = vadd.f32 0.0, %v1724
        %v1726 = vpop.f32.mrb[0].mxu0
        %v1727 = vadd.f32 0.0, %v1726
        %1728 = vmatprep.mubr.bf16.mxu0 0
        %1729 = vmatmul.mubr.bf16.gmra.mrb[0].mxu0 %v1405
        %v1730 = vpop.f32.mrb[0].mxu0
        %v1731 = vadd.f32 0.0, %v1730
        %v1732 = vpop.f32.mrb[0].mxu0
        %v1733 = vadd.f32 0.0, %v1732
        %v1734 = vpop.f32.mrb[0].mxu0
        %v1735 = vadd.f32 0.0, %v1734
        %v1736 = vpop.f32.mrb[0].mxu0
        %v1737 = vadd.f32 0.0, %v1736
        %1738 = vmatprep.mubr.bf16.mxu0 0
        %1739 = vmatmul.mubr.bf16.gmra.mrb[0].mxu0 %v1408
        %v1740 = vpop.f32.mrb[0].mxu0
        %v1741 = vadd.f32 0.0, %v1740
        %v1742 = vpop.f32.mrb[0].mxu0
        %v1743 = vadd.f32 0.0, %v1742
        %v1744 = vpop.f32.mrb[0].mxu0
        %v1745 = vadd.f32 0.0, %v1744
        %v1746 = vpop.f32.mrb[0].mxu0
        %v1747 = vadd.f32 0.0, %v1746
        %1748 = vmatprep.mubr.bf16.mxu0 0
        %1749 = vmatmul.mubr.bf16.gmra.mrb[0].mxu0 %v1411
        %v1750 = vpop.f32.mrb[0].mxu0
        %v1751 = vadd.f32 0.0, %v1750
        %v1752 = vpop.f32.mrb[0].mxu0
        %v1753 = vadd.f32 0.0, %v1752
        %v1754 = vpop.f32.mrb[0].mxu0
        %v1755 = vadd.f32 0.0, %v1754
        %v1756 = vpop.f32.mrb[0].mxu0
        %v1757 = vadd.f32 0.0, %v1756
        %1758 = vmatprep.mubr.bf16.mxu0 0
        %1759 = vmatmul.mubr.bf16.gmra.mrb[0].mxu0 %v1414
        %v1760 = vpop.f32.mrb[0].mxu0
        %v1761 = vadd.f32 0.0, %v1760
        %v1762 = vpop.f32.mrb[0].mxu0
        %v1763 = vadd.f32 0.0, %v1762
        %v1764 = vpop.f32.mrb[0].mxu0
        %v1765 = vadd.f32 0.0, %v1764
        %v1766 = vpop.f32.mrb[0].mxu0
        %v1767 = vadd.f32 0.0, %v1766
        %1768 = vdwg.mxu0
        %1769 = vst [vmem:[%s191] sm:$0xff] %v1451
        %1770 = vst [vmem:[%s191 + $0x8] sm:$0xff] %v1453
        %1771 = vst [vmem:[%s191 + $0x10] sm:$0xff] %v1455
        %1772 = vst [vmem:[%s191 + $0x18] sm:$0xff] %v1457
        %1773 = vst [vmem:[%s191 + $0x20] sm:$0xff] %v1461
        %1774 = vst [vmem:[%s191 + $0x28] sm:$0xff] %v1463
        %1775 = vst [vmem:[%s191 + $0x30] sm:$0xff] %v1465
        %1776 = vst [vmem:[%s191 + $0x38] sm:$0xff] %v1467
        %1777 = vst [vmem:[%s191 + $0x40] sm:$0xff] %v1471
        %1778 = vst [vmem:[%s191 + $0x48] sm:$0xff] %v1473
        %1779 = vst [vmem:[%s191 + $0x50] sm:$0xff] %v1475
        %1780 = vst [vmem:[%s191 + $0x58] sm:$0xff] %v1477
        %1781 = vst [vmem:[%s191 + $0x60] sm:$0xff] %v1481
        %1782 = vst [vmem:[%s191 + $0x68] sm:$0xff] %v1483
        %1783 = vst [vmem:[%s191 + $0x70] sm:$0xff] %v1485
        %1784 = vst [vmem:[%s191 + $0x78] sm:$0xff] %v1487
        %1785 = vst [vmem:[%s191 + $0x80] sm:$0xff] %v1491
        %1786 = vst [vmem:[%s191 + $0x88] sm:$0xff] %v1493
        %1787 = vst [vmem:[%s191 + $0x90] sm:$0xff] %v1495
        %1788 = vst [vmem:[%s191 + $0x98] sm:$0xff] %v1497
        %1789 = vst [vmem:[%s191 + $0xa0] sm:$0xff] %v1501
        %1790 = vst [vmem:[%s191 + $0xa8] sm:$0xff] %v1503
        %1791 = vst [vmem:[%s191 + $0xb0] sm:$0xff] %v1505
        %1792 = vst [vmem:[%s191 + $0xb8] sm:$0xff] %v1507
        %1793 = vst [vmem:[%s191 + $0xc0] sm:$0xff] %v1511
        %1794 = vst [vmem:[%s191 + $0xc8] sm:$0xff] %v1513
        %1795 = vst [vmem:[%s191 + $0xd0] sm:$0xff] %v1515
        %1796 = vst [vmem:[%s191 + $0xd8] sm:$0xff] %v1517
        %1797 = vst [vmem:[%s191 + $0xe0] sm:$0xff] %v1521
        %1798 = vst [vmem:[%s191 + $0xe8] sm:$0xff] %v1523
        %1799 = vst [vmem:[%s191 + $0xf0] sm:$0xff] %v1525
        %1800 = vst [vmem:[%s191 + $0xf8] sm:$0xff] %v1527
        %1801 = vst [vmem:[%s191 + $0x100] sm:$0xff] %v1531
        %1802 = vst [vmem:[%s191 + $0x108] sm:$0xff] %v1533
        %1803 = vst [vmem:[%s191 + $0x110] sm:$0xff] %v1535
        %1804 = vst [vmem:[%s191 + $0x118] sm:$0xff] %v1537
        %1805 = vst [vmem:[%s191 + $0x120] sm:$0xff] %v1541
        %1806 = vst [vmem:[%s191 + $0x128] sm:$0xff] %v1543
        %1807 = vst [vmem:[%s191 + $0x130] sm:$0xff] %v1545
        %1808 = vst [vmem:[%s191 + $0x138] sm:$0xff] %v1547
        %1809 = vst [vmem:[%s191 + $0x140] sm:$0xff] %v1551
        %1810 = vst [vmem:[%s191 + $0x148] sm:$0xff] %v1553
        %1811 = vst [vmem:[%s191 + $0x150] sm:$0xff] %v1555
        %1812 = vst [vmem:[%s191 + $0x158] sm:$0xff] %v1557
        %1813 = vst [vmem:[%s191 + $0x160] sm:$0xff] %v1561
        %1814 = vst [vmem:[%s191 + $0x168] sm:$0xff] %v1563
        %1815 = vst [vmem:[%s191 + $0x170] sm:$0xff] %v1565
        %1816 = vst [vmem:[%s191 + $0x178] sm:$0xff] %v1567
        %1817 = vst [vmem:[%s191 + $0x180] sm:$0xff] %v1571
        %1818 = vst [vmem:[%s191 + $0x188] sm:$0xff] %v1573
        %1819 = vst [vmem:[%s191 + $0x190] sm:$0xff] %v1575
        %1820 = vst [vmem:[%s191 + $0x198] sm:$0xff] %v1577
        %1821 = vst [vmem:[%s191 + $0x1a0] sm:$0xff] %v1581
        %1822 = vst [vmem:[%s191 + $0x1a8] sm:$0xff] %v1583
        %1823 = vst [vmem:[%s191 + $0x1b0] sm:$0xff] %v1585
        %1824 = vst [vmem:[%s191 + $0x1b8] sm:$0xff] %v1587
        %1825 = vst [vmem:[%s191 + $0x1c0] sm:$0xff] %v1591
        %1826 = vst [vmem:[%s191 + $0x1c8] sm:$0xff] %v1593
        %1827 = vst [vmem:[%s191 + $0x1d0] sm:$0xff] %v1595
        %1828 = vst [vmem:[%s191 + $0x1d8] sm:$0xff] %v1597
        %1829 = vst [vmem:[%s191 + $0x1e0] sm:$0xff] %v1601
        %1830 = vst [vmem:[%s191 + $0x1e8] sm:$0xff] %v1603
        %1831 = vst [vmem:[%s191 + $0x1f0] sm:$0xff] %v1605
        %1832 = vst [vmem:[%s191 + $0x1f8] sm:$0xff] %v1607
        %1833 = vst [vmem:[%s191 + $0x200] sm:$0xff] %v1611
        %1834 = vst [vmem:[%s191 + $0x208] sm:$0xff] %v1613
        %1835 = vst [vmem:[%s191 + $0x210] sm:$0xff] %v1615
        %1836 = vst [vmem:[%s191 + $0x218] sm:$0xff] %v1617
        %1837 = vst [vmem:[%s191 + $0x220] sm:$0xff] %v1621
        %1838 = vst [vmem:[%s191 + $0x228] sm:$0xff] %v1623
        %1839 = vst [vmem:[%s191 + $0x230] sm:$0xff] %v1625
        %1840 = vst [vmem:[%s191 + $0x238] sm:$0xff] %v1627
        %1841 = vst [vmem:[%s191 + $0x240] sm:$0xff] %v1631
        %1842 = vst [vmem:[%s191 + $0x248] sm:$0xff] %v1633
        %1843 = vst [vmem:[%s191 + $0x250] sm:$0xff] %v1635
        %1844 = vst [vmem:[%s191 + $0x258] sm:$0xff] %v1637
        %1845 = vst [vmem:[%s191 + $0x260] sm:$0xff] %v1641
        %1846 = vst [vmem:[%s191 + $0x268] sm:$0xff] %v1643
        %1847 = vst [vmem:[%s191 + $0x270] sm:$0xff] %v1645
        %1848 = vst [vmem:[%s191 + $0x278] sm:$0xff] %v1647
        %1849 = vst [vmem:[%s191 + $0x280] sm:$0xff] %v1651
        %1850 = vst [vmem:[%s191 + $0x288] sm:$0xff] %v1653
        %1851 = vst [vmem:[%s191 + $0x290] sm:$0xff] %v1655
        %1852 = vst [vmem:[%s191 + $0x298] sm:$0xff] %v1657
        %1853 = vst [vmem:[%s191 + $0x2a0] sm:$0xff] %v1661
        %1854 = vst [vmem:[%s191 + $0x2a8] sm:$0xff] %v1663
        %1855 = vst [vmem:[%s191 + $0x2b0] sm:$0xff] %v1665
        %1856 = vst [vmem:[%s191 + $0x2b8] sm:$0xff] %v1667
        %1857 = vst [vmem:[%s191 + $0x2c0] sm:$0xff] %v1671
        %1858 = vst [vmem:[%s191 + $0x2c8] sm:$0xff] %v1673
        %1859 = vst [vmem:[%s191 + $0x2d0] sm:$0xff] %v1675
        %1860 = vst [vmem:[%s191 + $0x2d8] sm:$0xff] %v1677
        %1861 = vst [vmem:[%s191 + $0x2e0] sm:$0xff] %v1681
        %1862 = vst [vmem:[%s191 + $0x2e8] sm:$0xff] %v1683
        %1863 = vst [vmem:[%s191 + $0x2f0] sm:$0xff] %v1685
        %1864 = vst [vmem:[%s191 + $0x2f8] sm:$0xff] %v1687
        %1865 = vst [vmem:[%s191 + $0x300] sm:$0xff] %v1691
        %1866 = vst [vmem:[%s191 + $0x308] sm:$0xff] %v1693
        %1867 = vst [vmem:[%s191 + $0x310] sm:$0xff] %v1695
        %1868 = vst [vmem:[%s191 + $0x318] sm:$0xff] %v1697
        %1869 = vst [vmem:[%s191 + $0x320] sm:$0xff] %v1701
        %1870 = vst [vmem:[%s191 + $0x328] sm:$0xff] %v1703
        %1871 = vst [vmem:[%s191 + $0x330] sm:$0xff] %v1705
        %1872 = vst [vmem:[%s191 + $0x338] sm:$0xff] %v1707
        %1873 = vst [vmem:[%s191 + $0x340] sm:$0xff] %v1711
        %1874 = vst [vmem:[%s191 + $0x348] sm:$0xff] %v1713
        %1875 = vst [vmem:[%s191 + $0x350] sm:$0xff] %v1715
        %1876 = vst [vmem:[%s191 + $0x358] sm:$0xff] %v1717
        %1877 = vst [vmem:[%s191 + $0x360] sm:$0xff] %v1721
        %1878 = vst [vmem:[%s191 + $0x368] sm:$0xff] %v1723
        %1879 = vst [vmem:[%s191 + $0x370] sm:$0xff] %v1725
        %1880 = vst [vmem:[%s191 + $0x378] sm:$0xff] %v1727
        %1881 = vst [vmem:[%s191 + $0x380] sm:$0xff] %v1731
        %1882 = vst [vmem:[%s191 + $0x388] sm:$0xff] %v1733
        %1883 = vst [vmem:[%s191 + $0x390] sm:$0xff] %v1735
        %1884 = vst [vmem:[%s191 + $0x398] sm:$0xff] %v1737
        %1885 = vst [vmem:[%s191 + $0x3a0] sm:$0xff] %v1741
        %1886 = vst [vmem:[%s191 + $0x3a8] sm:$0xff] %v1743
        %1887 = vst [vmem:[%s191 + $0x3b0] sm:$0xff] %v1745
        %1888 = vst [vmem:[%s191 + $0x3b8] sm:$0xff] %v1747
        %1889 = vst [vmem:[%s191 + $0x3c0] sm:$0xff] %v1751
        %1890 = vst [vmem:[%s191 + $0x3c8] sm:$0xff] %v1753
        %1891 = vst [vmem:[%s191 + $0x3d0] sm:$0xff] %v1755
        %1892 = vst [vmem:[%s191 + $0x3d8] sm:$0xff] %v1757
        %1893 = vst [vmem:[%s191 + $0x3e0] sm:$0xff] %v1761
        %1894 = vst [vmem:[%s191 + $0x3e8] sm:$0xff] %v1763
        %1895 = vst [vmem:[%s191 + $0x3f0] sm:$0xff] %v1765
        %1896 = vst [vmem:[%s191 + $0x3f8] sm:$0xff] %v1767
        %s1897 = sand.u32 %s115, 1
        %s1898 = scalar_lea.sflag [#allocation3], %s1897
        %s1899 = sand.u32 %s115, 1
        %s1900 = smul.addr %s1899, 1024
        %s1901 = scalar_lea.vmem [#allocation2], %s1900
        // Predicated region
        $region37: #{tpu_custom_call.1} parent=35 // pred_check
          %p1902 = pneg %p125
        $region38: #{tpu_custom_call.1} parent=35 // pred_check_branch
          %1904 = sbr.rel (%p1902) target = $region40
        $region39: #{tpu_custom_call.1} parent=35 // pred_region
          %s1905 = smul.u32 64, %s18
          %s1907 = ssub.s32 16384, 16384
          %1908 = vsyncadd %s1898, %s1907
          %s1909 = smul.addr %s1905, 2
          %s1910 = smul.addr %s1909, 128
          %s1911 = scalar_lea.hbm %s4, %s1910
          %s1912 = sshll.u32 %s1901, 4
          %s1913 = int_to_ptr.vmem [resolvable:$true] %s1912
          %1918 = dma.vmem_to_hbm [thread:$0]  %s1913, 16384, %s1911, %s1898, 256, 256, 16
        $region40: #{tpu_custom_call.1} parent=35 // pred_fallthru
          _
      $region36: #{tpu_custom_call.1} parent=5 // pred_fallthru
        _
      %p1919 = scmp.le.s32.totalorder 2, %s13
      // Predicated region
      $region41: #{tpu_custom_call.1} parent=5 // pred_check
        %p1920 = pneg %p1919
      $region42: #{tpu_custom_call.1} parent=5 // pred_check_branch
        %1922 = sbr.rel (%p1920) target = $region44
      $region43: #{tpu_custom_call.1} parent=5 // pred_region
        %s1923 = ssub.s32 %s13, 2
        // Predicated region
        $region45: #{tpu_custom_call.1} parent=43 // pred_check
          %p1924 = pneg %p131
        $region46: #{tpu_custom_call.1} parent=43 // pred_check_branch
          %1926 = sbr.rel (%p1924) target = $region48
        $region47: #{tpu_custom_call.1} parent=43 // pred_region
          %s1927 = sand.u32 %s116, 1
          %s1928 = scalar_lea.sflag [#allocation3], %s1927
          %s1929 = sand.u32 %s116, 1
          %s1930 = smul.addr %s1929, 1024
          %s1931 = scalar_lea.vmem [#allocation2], %s1930
          %1932 = dma.done %s1928, 16384
        $region48: #{tpu_custom_call.1} parent=43 // pred_fallthru
          _
      $region44: #{tpu_custom_call.1} parent=5 // pred_fallthru
        _
    $region6: #{tpu_custom_call.1} parent=1 // loop_footer
      %s17 = sadd.s32 1, %s13
    $region7: #{tpu_custom_call.1} parent=1 // loop_footer_branch
      %12 = sbr.rel target = $region3
    $region8: #{tpu_custom_call.1} parent=1 // loop_exit
      _
    %1933 = vsyncpa [#allocation3], 1
    %s1934 = scalar_lea.sflag [#allocation3], 1
    %1935 = vsyncpa %s1934, 1

</llo_original>
